<compile_context>
chip_gen: v5e
topology: v5e:2x2
jax: 0.10.0
libtpu: 0.0.40
codegen_flags: <defaults>
</compile_context>

<pallas_src>
import functools

import jax
import jax.numpy as jnp
from jax.experimental import pallas as pl
from jax.experimental.pallas import tpu as pltpu

EPS = 1e-5
LANE = 128
SUBLANE = 8
VMEM_LIMIT = 32 * 1024 * 1024  # safe on v7x (64 MiB phys), raises v5e's 16 MiB default


def _rup(n, m):
    return ((n + m - 1) // m) * m


def _pad2(a, rows, cols):
    r, c = a.shape
    return jnp.pad(a, ((0, rows - r), (0, cols - c)))


def _pad1(a, n):
    return jnp.pad(a, ((0, n - a.shape[0]),))


def _ce(flops, nbytes):
    return pl.CostEstimate(flops=int(flops), transcendentals=0,
                           bytes_accessed=int(nbytes))


# ----------------------------- Pallas kernels ------------------------------ #

def _conv1_shortcut_kernel(x_ref, w_ref, z1_ref, zsc_ref, st_ref, *, f1p):
    """Fused 1x1 conv for main branch + shortcut (shared input row tile).

    z = x @ [w1 | ws]; columns are split into z1 / z_shortcut and per-tile
    per-channel (sum, sum^2) partials are emitted for the BatchNorm stats.
    """
    z = jnp.dot(x_ref[...], w_ref[...], preferred_element_type=jnp.float32)
    z1_ref[...] = z[:, :f1p].astype(z1_ref.dtype)
    zsc_ref[...] = z[:, f1p:].astype(zsc_ref.dtype)
    st_ref[0] = jnp.concatenate(
        [jnp.sum(z, axis=0, keepdims=True),
         jnp.sum(z * z, axis=0, keepdims=True)], axis=0)


def _matmul_stats_kernel(x_ref, w_ref, z_ref, st_ref):
    """Plain 1x1 conv (matmul) row tile + per-tile per-channel BN partials."""
    z = jnp.dot(x_ref[...], w_ref[...], preferred_element_type=jnp.float32)
    z_ref[...] = z.astype(z_ref.dtype)
    st_ref[0] = jnp.concatenate(
        [jnp.sum(z, axis=0, keepdims=True),
         jnp.sum(z * z, axis=0, keepdims=True)], axis=0)


def _conv3x3_kernel(z1_ref, coef_ref, w2_ref, z2_ref, st_ref, ypad_ref,
                    *, ho, wo, f1p, f2p):
    """3x3 conv (pad=1) fused with the preceding BN1-apply + ReLU.

    The im2col never touches HBM: BN+ReLU is applied to the raw conv1 output,
    the result is written into a zero-padded VMEM halo scratch, and the conv is
    9 shifted matmuls accumulated in f32.  Also emits BN2 stat partials.
    """
    scale = coef_ref[0:1, :]
    shift = coef_ref[1:2, :]
    y1 = jnp.maximum(z1_ref[0].astype(jnp.float32) * scale + shift, 0.0)

    ypad_ref[...] = jnp.zeros_like(ypad_ref)
    ypad_ref[1:ho + 1, 1:wo + 1, :] = y1.astype(ypad_ref.dtype)

    acc = jnp.zeros((ho * wo, f2p), jnp.float32)
    for idx in range(9):
        ky, kx = idx // 3, idx % 3
        patch = ypad_ref[ky:ky + ho, kx:kx + wo, :].reshape(ho * wo, f1p)
        acc = acc + jnp.dot(patch, w2_ref[idx],
                            preferred_element_type=jnp.float32)

    z2_ref[0] = acc.reshape(ho, wo, f2p).astype(z2_ref.dtype)
    st_ref[0] = jnp.concatenate(
        [jnp.sum(acc, axis=0, keepdims=True),
         jnp.sum(acc * acc, axis=0, keepdims=True)], axis=0)


def _conv1x1_bn_relu_kernel(z2_ref, coef_ref, w3_ref, z3_ref, st_ref,
                            *, tm, m_true, cdt):
    """y2 = ReLU(BN2(z2)) per tile, then z3 = y2 @ w3 (+ BN3 stat partials).

    Rows >= m_true are zero-padded rows of the flattened activation; they are
    masked so they do not pollute the BN3 statistics.
    """
    i = pl.program_id(0)
    scale = coef_ref[0:1, :]
    shift = coef_ref[1:2, :]
    y2 = jnp.maximum(z2_ref[...].astype(jnp.float32) * scale + shift, 0.0)
    row = jax.lax.broadcasted_iota(jnp.int32, (tm, 1), 0) + i * tm
    y2 = jnp.where(row < m_true, y2, 0.0)
    z3 = jnp.dot(y2.astype(cdt), w3_ref[...],
                 preferred_element_type=jnp.float32)
    z3_ref[...] = z3.astype(z3_ref.dtype)
    st_ref[0] = jnp.concatenate(
        [jnp.sum(z3, axis=0, keepdims=True),
         jnp.sum(z3 * z3, axis=0, keepdims=True)], axis=0)


def _bn_add_relu_kernel(z3_ref, zsc_ref, coef_ref, o_ref):
    """out = ReLU(BN3(z3) + s_sc*z_sc + b_sc); coef rows = [s3, b3, s_sc, b_sc].

    For IdentityBlock the shortcut coefs are (1, 0) so this is a plain
    residual add; for ConvBlock they carry the shortcut BatchNorm.
    """
    y = (z3_ref[...].astype(jnp.float32) * coef_ref[0:1, :] + coef_ref[1:2, :]
         + zsc_ref[...].astype(jnp.float32) * coef_ref[2:3, :] + coef_ref[3:4, :])
    o_ref[...] = jnp.maximum(y, 0.0)


# ------------------------- host-side BN stat folding ----------------------- #

def _bn_scale_shift(stats, gamma, beta, count):
    """Fold batch (sum, sum^2) stats + gamma/beta into per-channel scale/shift."""
    mean = stats[0] / count
    var = jnp.maximum(stats[1] / count - mean * mean, 0.0)
    scale = gamma * jax.lax.rsqrt(var + EPS)
    shift = beta - mean * scale
    return scale, shift


# ------------------------------ parameters ---------------------------------- #

def _conv_w(k, shape):
    fan_in = shape[1] * shape[2] * shape[3]
    return jax.random.normal(k, shape, jnp.float32) * (2.0 / fan_in) ** 0.5


def init_conv_block(key, in_channels, filters):
    """ConvBlock params (PyTorch OIHW conv layout)."""
    F1, F2, F3 = filters
    keys = jax.random.split(key, 12)
    return {
        "w1": _conv_w(keys[0], (F1, in_channels, 1, 1)),
        "w2": _conv_w(keys[1], (F2, F1, 3, 3)),
        "w3": _conv_w(keys[2], (F3, F2, 1, 1)),
        "ws": _conv_w(keys[3], (F3, in_channels, 1, 1)),
        "g1": 1.0 + 0.1 * jax.random.normal(keys[4], (F1,), jnp.float32),
        "b1": 0.1 * jax.random.normal(keys[5], (F1,), jnp.float32),
        "g2": 1.0 + 0.1 * jax.random.normal(keys[6], (F2,), jnp.float32),
        "b2": 0.1 * jax.random.normal(keys[7], (F2,), jnp.float32),
        "g3": 1.0 + 0.1 * jax.random.normal(keys[8], (F3,), jnp.float32),
        "b3": 0.1 * jax.random.normal(keys[9], (F3,), jnp.float32),
        "gs": 1.0 + 0.1 * jax.random.normal(keys[10], (F3,), jnp.float32),
        "bs": 0.1 * jax.random.normal(keys[11], (F3,), jnp.float32),
    }


def init_identity_block(key, in_channels, filters):
    """IdentityBlock params (no shortcut conv/BN)."""
    F1, F2, F3 = filters
    keys = jax.random.split(key, 9)
    return {
        "w1": _conv_w(keys[0], (F1, in_channels, 1, 1)),
        "w2": _conv_w(keys[1], (F2, F1, 3, 3)),
        "w3": _conv_w(keys[2], (F3, F2, 1, 1)),
        "g1": 1.0 + 0.1 * jax.random.normal(keys[3], (F1,), jnp.float32),
        "b1": 0.1 * jax.random.normal(keys[4], (F1,), jnp.float32),
        "g2": 1.0 + 0.1 * jax.random.normal(keys[5], (F2,), jnp.float32),
        "b2": 0.1 * jax.random.normal(keys[6], (F2,), jnp.float32),
        "g3": 1.0 + 0.1 * jax.random.normal(keys[7], (F3,), jnp.float32),
        "b3": 0.1 * jax.random.normal(keys[8], (F3,), jnp.float32),
    }


# ------------------------- bottleneck block forward ------------------------- #

def _bottleneck_forward(params, x, stride, has_shortcut_conv, compute_dtype):
    """Shared forward for ConvBlock (projection shortcut) / IdentityBlock."""
    B, Cin, H, W = x.shape
    F1 = params["w1"].shape[0]
    F2 = params["w2"].shape[0]
    F3 = params["w3"].shape[0]
    cdt = compute_dtype

    if not has_shortcut_conv and (stride != 1 or Cin != F3):
        raise ValueError("IdentityBlock requires stride=1 and in_channels==F3")

    # lane-dense channel padding (multiples of 128)
    Cinp, F1p, F2p, F3p = (_rup(c, LANE) for c in (Cin, F1, F2, F3))

    Ho = (H - 1) // stride + 1
    Wo = (W - 1) // stride + 1
    M = B * Ho * Wo
    TM = min(512, _rup(M, SUBLANE))      # row tile (multiple of 8 sublanes)
    Mp = _rup(M, TM)
    n_m = Mp // TM

    itm = jnp.dtype(cdt).itemsize
    dsem = ("parallel",)

    # ---- one-time layout plumbing (activations stay NHWC from here on) ----
    x_nhwc = jnp.transpose(x, (0, 2, 3, 1))
    xs = x_nhwc[:, ::stride, ::stride, :]        # stride-s 1x1 conv == subsample
    xs = jnp.pad(xs, ((0, 0), (0, 0), (0, 0), (0, Cinp - Cin)))
    xs_flat = jnp.pad(xs.reshape(M, Cinp), ((0, Mp - M), (0, 0))).astype(cdt)

    w1 = _pad2(params["w1"].reshape(F1, Cin).T, Cinp, F1p)
    w2 = jnp.pad(params["w2"].transpose(2, 3, 1, 0),
                 ((0, 0), (0, 0), (0, F1p - F1), (0, F2p - F2)))
    w2 = w2.reshape(9, F1p, F2p).astype(cdt)
    w3 = _pad2(params["w3"].reshape(F3, F2).T, F2p, F3p).astype(cdt)

    g1, b1 = _pad1(params["g1"], F1p), _pad1(params["b1"], F1p)
    g2, b2 = _pad1(params["g2"], F2p), _pad1(params["b2"], F2p)
    g3, b3 = _pad1(params["g3"], F3p), _pad1(params["b3"], F3p)

    # ---- kernel 1: 1x1 conv (+ optional fused shortcut conv), row-tiled ----
    if has_shortcut_conv:
        ws = _pad2(params["ws"].reshape(F3, Cin).T, Cinp, F3p)
        gs, bs = _pad1(params["gs"], F3p), _pad1(params["bs"], F3p)
        Ncat = F1p + F3p
        w_cat = jnp.concatenate([w1, ws], axis=1).astype(cdt)      # (Cinp, Ncat)

        z1, zsc, st1 = pl.pallas_call(
            functools.partial(_conv1_shortcut_kernel, f1p=F1p),
            out_shape=(jax.ShapeDtypeStruct((Mp, F1p), cdt),
                       jax.ShapeDtypeStruct((Mp, F3p), cdt),
                       jax.ShapeDtypeStruct((n_m, 2, Ncat), jnp.float32)),
            grid=(n_m,),
            in_specs=[pl.BlockSpec((TM, Cinp), lambda i: (i, 0)),
                      pl.BlockSpec((Cinp, Ncat), lambda i: (0, 0))],
            out_specs=(pl.BlockSpec((TM, F1p), lambda i: (i, 0)),
                       pl.BlockSpec((TM, F3p), lambda i: (i, 0)),
                       pl.BlockSpec((1, 2, Ncat), lambda i: (i, 0, 0))),
            compiler_params=pltpu.CompilerParams(
                dimension_semantics=dsem, vmem_limit_bytes=VMEM_LIMIT),
            cost_estimate=_ce(2 * Mp * Cinp * Ncat,
                              (Mp * Cinp + Cinp * Ncat + Mp * Ncat) * itm),
        )(xs_flat, w_cat)

        stats1 = jnp.sum(st1, axis=0)
        s1, sh1 = _bn_scale_shift(stats1[:, :F1p], g1, b1, float(M))
        ssc, shsc = _bn_scale_shift(stats1[:, F1p:], gs, bs, float(M))
        residual = zsc
    else:
        w1c = w1.astype(cdt)
        z1, st1 = pl.pallas_call(
            _matmul_stats_kernel,
            out_shape=(jax.ShapeDtypeStruct((Mp, F1p), cdt),
                       jax.ShapeDtypeStruct((n_m, 2, F1p), jnp.float32)),
            grid=(n_m,),
            in_specs=[pl.BlockSpec((TM, Cinp), lambda i: (i, 0)),
                      pl.BlockSpec((Cinp, F1p), lambda i: (0, 0))],
            out_specs=(pl.BlockSpec((TM, F1p), lambda i: (i, 0)),
                       pl.BlockSpec((1, 2, F1p), lambda i: (i, 0, 0))),
            compiler_params=pltpu.CompilerParams(
                dimension_semantics=dsem, vmem_limit_bytes=VMEM_LIMIT),
            cost_estimate=_ce(2 * Mp * Cinp * F1p,
                              (Mp * Cinp + Cinp * F1p + Mp * F1p) * itm),
        )(xs_flat, w1c)

        s1, sh1 = _bn_scale_shift(jnp.sum(st1, axis=0), g1, b1, float(M))
        ssc = jnp.ones((F3p,), jnp.float32)      # identity shortcut: scale=1
        shsc = jnp.zeros((F3p,), jnp.float32)    # identity shortcut: shift=0
        residual = xs_flat                       # Cinp == F3p since Cin == F3

    # ---- kernel 2: 3x3 conv fused with BN1-apply + ReLU (no host im2col) ----
    z1_sp = z1[:M].reshape(B, Ho, Wo, F1p)
    coef1 = jnp.stack([s1, sh1], axis=0)                           # (2, F1p)

    z2_sp, st2 = pl.pallas_call(
        functools.partial(_conv3x3_kernel, ho=Ho, wo=Wo, f1p=F1p, f2p=F2p),
        out_shape=(jax.ShapeDtypeStruct((B, Ho, Wo, F2p), cdt),
                   jax.ShapeDtypeStruct((B, 2, F2p), jnp.float32)),
        grid=(B,),
        in_specs=[pl.BlockSpec((1, Ho, Wo, F1p), lambda b: (b, 0, 0, 0)),
                  pl.BlockSpec((2, F1p), lambda b: (0, 0)),
                  pl.BlockSpec((9, F1p, F2p), lambda b: (0, 0, 0))],
        out_specs=(pl.BlockSpec((1, Ho, Wo, F2p), lambda b: (b, 0, 0, 0)),
                   pl.BlockSpec((1, 2, F2p), lambda b: (b, 0, 0))),
        scratch_shapes=[pltpu.VMEM((Ho + 2, Wo + 2, F1p), cdt)],
        compiler_params=pltpu.CompilerParams(
            dimension_semantics=dsem, vmem_limit_bytes=VMEM_LIMIT),
        cost_estimate=_ce(2 * M * 9 * F1p * F2p,
                          (M * F1p + 9 * F1p * F2p + M * F2p) * itm),
    )(z1_sp, coef1, w2)

    s2, sh2 = _bn_scale_shift(jnp.sum(st2, axis=0), g2, b2, float(M))

    # ---- kernel 3: conv3 (1x1) fused with BN2-apply + ReLU, row-tiled ----
    z2_flat = jnp.pad(z2_sp.reshape(M, F2p), ((0, Mp - M), (0, 0)))
    coef2 = jnp.stack([s2, sh2], axis=0)                           # (2, F2p)

    z3, st3 = pl.pallas_call(
        functools.partial(_conv1x1_bn_relu_kernel, tm=TM, m_true=M, cdt=cdt),
        out_shape=(jax.ShapeDtypeStruct((Mp, F3p), cdt),
                   jax.ShapeDtypeStruct((n_m, 2, F3p), jnp.float32)),
        grid=(n_m,),
        in_specs=[pl.BlockSpec((TM, F2p), lambda i: (i, 0)),
                  pl.BlockSpec((2, F2p), lambda i: (0, 0)),
                  pl.BlockSpec((F2p, F3p), lambda i: (0, 0))],
        out_specs=(pl.BlockSpec((TM, F3p), lambda i: (i, 0)),
                   pl.BlockSpec((1, 2, F3p), lambda i: (i, 0, 0))),
        compiler_params=pltpu.CompilerParams(
            dimension_semantics=dsem, vmem_limit_bytes=VMEM_LIMIT),
        cost_estimate=_ce(2 * Mp * F2p * F3p,
                          (Mp * F2p + F2p * F3p + Mp * F3p) * itm),
    )(z2_flat, coef2, w3)

    s3, sh3 = _bn_scale_shift(jnp.sum(st3, axis=0), g3, b3, float(M))

    # ---- kernel 4: BN3 + shortcut (+BN) + residual add + ReLU, row-tiled ----
    coef3 = jnp.stack([s3, sh3, ssc, shsc], axis=0)                # (4, F3p)

    out_flat = pl.pallas_call(
        _bn_add_relu_kernel,
        out_shape=jax.ShapeDtypeStruct((Mp, F3p), jnp.float32),
        grid=(n_m,),
        in_specs=[pl.BlockSpec((TM, F3p), lambda i: (i, 0)),
                  pl.BlockSpec((TM, F3p), lambda i: (i, 0)),
                  pl.BlockSpec((4, F3p), lambda i: (0, 0))],
        out_specs=pl.BlockSpec((TM, F3p), lambda i: (i, 0)),
        compiler_params=pltpu.CompilerParams(
            dimension_semantics=dsem, vmem_limit_bytes=VMEM_LIMIT),
        cost_estimate=_ce(4 * Mp * F3p, 3 * Mp * F3p * 4),
    )(z3, residual, coef3)

    out = out_flat[:M].reshape(B, Ho, Wo, F3p)[:, :, :, :F3]
    return jnp.transpose(out, (0, 3, 1, 2))      # single NHWC->NCHW at the edge


def conv_block_forward(params, x, stride=2, compute_dtype=jnp.bfloat16):
    """PyTorch ConvBlock.forward (x: NCHW, returns NCHW)."""
    return _bottleneck_forward(params, x, stride, True, compute_dtype)


def identity_block_forward(params, x, compute_dtype=jnp.bfloat16):
    """PyTorch IdentityBlock.forward (x: NCHW, returns NCHW)."""
    return _bottleneck_forward(params, x, 1, False, compute_dtype)


# ------------------------------ references ---------------------------------- #

def _ref_conv(x, w, stride, padding):
    return jax.lax.conv_general_dilated(
        x, w, window_strides=(stride, stride),
        padding=[(padding, padding), (padding, padding)],
        dimension_numbers=("NCHW", "OIHW", "NCHW"))


def _ref_bn(x, g, b):
    m = x.mean(axis=(0, 2, 3), keepdims=True)
    v = ((x - m) ** 2).mean(axis=(0, 2, 3), keepdims=True)
    return (x - m) / jnp.sqrt(v + EPS) * g.reshape(1, -1, 1, 1) + b.reshape(1, -1, 1, 1)


def conv_block_reference(params, x, stride=2):
    y = _ref_conv(x, params["w1"], stride, 0)
    y = jnp.maximum(_ref_bn(y, params["g1"], params["b1"]), 0.0)
    y = _ref_conv(y, params["w2"], 1, 1)
    y = jnp.maximum(_ref_bn(y, params["g2"], params["b2"]), 0.0)
    y = _ref_conv(y, params["w3"], 1, 0)
    y = _ref_bn(y, params["g3"], params["b3"])
    sc = _ref_conv(x, params["ws"], stride, 0)
    sc = _ref_bn(sc, params["gs"], params["bs"])
    return jnp.maximum(y + sc, 0.0)


def identity_block_reference(params, x):
    y = _ref_conv(x, params["w1"], 1, 0)
    y = jnp.maximum(_ref_bn(y, params["g1"], params["b1"]), 0.0)
    y = _ref_conv(y, params["w2"], 1, 1)
    y = jnp.maximum(_ref_bn(y, params["g2"], params["b2"]), 0.0)
    y = _ref_conv(y, params["w3"], 1, 0)
    y = _ref_bn(y, params["g3"], params["b3"])
    return jnp.maximum(y + x, 0.0)


# --------------------------------- main ------------------------------------ #

if __name__ == "__main__":
    key = jax.random.PRNGKey(0)
    k_x, k_cb, k_ib = jax.random.split(key, 3)

    B, Cin, H, W = 2, 4, 16, 16
    filters = [8, 8, 16]
    stride = 2

    x = jax.random.normal(k_x, (B, Cin, H, W), jnp.float32)
    p_cb = init_conv_block(k_cb, Cin, filters)
    p_ib = init_identity_block(k_ib, filters[2], filters)

    cb = jax.jit(conv_block_forward, static_argnames=("stride", "compute_dtype"))
    ib = jax.jit(identity_block_forward, static_argnames=("compute_dtype",))

    # mini layer2-style chain: ConvBlock -> IdentityBlock
    ref1 = conv_block_reference(p_cb, x, stride=stride)
    ref2 = identity_block_reference(p_ib, ref1)
    ref2_scale = float(jnp.max(jnp.abs(ref2)))

    # f32 MXU-input mode: near-bit-accuracy check against the XLA reference.
    y1_32 = cb(p_cb, x, stride=stride, compute_dtype=jnp.float32)
    y2_32 = jax.block_until_ready(ib(p_ib, y1_32, compute_dtype=jnp.float32))
    assert y1_32.shape == (B, filters[2], H // stride, W // stride), y1_32.shape
    assert y2_32.shape == y1_32.shape, y2_32.shape
    err1 = float(jnp.max(jnp.abs(y1_32 - ref1)))
    err2 = float(jnp.max(jnp.abs(y2_32 - ref2)))
    assert err1 < 1e-3, f"ConvBlock f32 max abs error too large: {err1}"
    assert err2 < 2e-3, f"IdentityBlock f32 max abs error too large: {err2}"

    # bf16 MXU-input mode (performance path): f32 accumulation/BN, loose check.
    y1_16 = cb(p_cb, x, stride=stride, compute_dtype=jnp.bfloat16)
    y2_16 = jax.block_until_ready(ib(p_ib, y1_16, compute_dtype=jnp.bfloat16))
    err16 = float(jnp.max(jnp.abs(y2_16 - ref2)))
    assert err16 <= 0.15 * ref2_scale + 1e-2, f"bf16 chain max abs error too large: {err16}"

    print("KERNEL_OK")
</pallas_src>

<mosaic_0001>
module attributes {stable_mosaic.version = 11 : i64} {
  func.func @_conv1_shortcut_kernel(%arg0: i32, %arg1: memref<128x128xf32, #tpu.memory_space<vmem>>, %arg2: memref<128x256xf32, #tpu.memory_space<vmem>>, %arg3: memref<128x128xf32, #tpu.memory_space<vmem>>, %arg4: memref<128x128xf32, #tpu.memory_space<vmem>>, %arg5: memref<1x2x256xf32, #tpu.memory_space<vmem>>) attributes {dimension_semantics = [#tpu.dimension_semantics<parallel>], iteration_bounds = array<i64: 1>, scalar_prefetch = 0 : i64, scratch_operands = 0 : i64, tpu.core_type = #tpu.core_type<tc>, window_params = [{transform_indices = @transform_0, window_bounds = array<i64: 128, 128>}, {pipeline_mode = #tpu.pipeline_mode<synchronous>, transform_indices = @transform_1, window_bounds = array<i64: 128, 256>}, {transform_indices = @transform_2, window_bounds = array<i64: 128, 128>}, {transform_indices = @transform_3, window_bounds = array<i64: 128, 128>}, {transform_indices = @transform_4, window_bounds = array<i64: 1, 2, 256>}]} {
    %c0 = arith.constant 0 : index
    %c0_0 = arith.constant 0 : index
    %0 = vector.load %arg1[%c0, %c0_0] : memref<128x128xf32, #tpu.memory_space<vmem>>, vector<128x128xf32>
    %c0_1 = arith.constant 0 : index
    %c0_2 = arith.constant 0 : index
    %1 = vector.load %arg2[%c0_1, %c0_2] : memref<128x256xf32, #tpu.memory_space<vmem>>, vector<128x256xf32>
    %cst = arith.constant dense<0.000000e+00> : vector<128x256xf32>
    %2 = tpu.matmul %0, %1, %cst {dimension_numbers = #tpu.dot_dimension_numbers<[1], [0], [0], [1], [0, 0, 1, 1], [], []>} : vector<128x128xf32>, vector<128x256xf32>, vector<128x256xf32> -> vector<128x256xf32>
    %3 = vector.extract_strided_slice %2 {offsets = [0, 0], sizes = [128, 128], strides = [1, 1]} : vector<128x256xf32> to vector<128x128xf32>
    %c0_3 = arith.constant 0 : index
    %c0_4 = arith.constant 0 : index
    %4 = vector.load %arg3[%c0_3, %c0_4] : memref<128x128xf32, #tpu.memory_space<vmem>>, vector<128x128xf32>
    tpu.vector_store %arg3[%c0_3, %c0_4], %3 {strides = array<i32>} : memref<128x128xf32, #tpu.memory_space<vmem>>, vector<128x128xf32>,
    %5 = vector.extract_strided_slice %2 {offsets = [0, 128], sizes = [128, 128], strides = [1, 1]} : vector<128x256xf32> to vector<128x128xf32>
    %c0_5 = arith.constant 0 : index
    %c0_6 = arith.constant 0 : index
    %6 = vector.load %arg4[%c0_5, %c0_6] : memref<128x128xf32, #tpu.memory_space<vmem>>, vector<128x128xf32>
    tpu.vector_store %arg4[%c0_5, %c0_6], %5 {strides = array<i32>} : memref<128x128xf32, #tpu.memory_space<vmem>>, vector<128x128xf32>,
    %cst_7 = arith.constant dense<0.000000e+00> : vector<256xf32>
    %7 = vector.multi_reduction <add>, %2, %cst_7 [0] : vector<128x256xf32> to vector<256xf32>
    %8 = vector.shape_cast %7 : vector<256xf32> to vector<1x256xf32>
    %9 = arith.mulf %2, %2 : vector<128x256xf32>
    %cst_8 = arith.constant dense<0.000000e+00> : vector<256xf32>
    %10 = vector.multi_reduction <add>, %9, %cst_8 [0] : vector<128x256xf32> to vector<256xf32>
    %11 = vector.shape_cast %10 : vector<256xf32> to vector<1x256xf32>
    %12 = tpu.concatenate %8, %11 in 0 : vector<1x256xf32>, vector<1x256xf32> -> vector<2x256xf32>
    %c0_9 = arith.constant 0 : index
    %c0_10 = arith.constant 0 : index
    %c0_11 = arith.constant 0 : index
    %13 = vector.load %arg5[%c0_9, %c0_10, %c0_11] : memref<1x2x256xf32, #tpu.memory_space<vmem>>, vector<1x2x256xf32>
    %14 = vector.shape_cast %13 : vector<1x2x256xf32> to vector<2x256xf32>
    %15 = vector.shape_cast %12 : vector<2x256xf32> to vector<1x2x256xf32>
    tpu.vector_store %arg5[%c0_9, %c0_10, %c0_11], %15 {strides = array<i32>} : memref<1x2x256xf32, #tpu.memory_space<vmem>>, vector<1x2x256xf32>,
    return
  }
  func.func @transform_0(%arg0: i32) -> (i32, i32) {
    %c0_i32 = arith.constant 0 : i32
    %c0_i32_0 = arith.constant 0 : i32
    return %arg0, %c0_i32 : i32, i32
  }
  func.func @transform_1(%arg0: i32) -> (i32, i32) {
    %c0_i32 = arith.constant 0 : i32
    %c0_i32_0 = arith.constant 0 : i32
    %c0_i32_1 = arith.constant 0 : i32
    return %c0_i32, %c0_i32_0 : i32, i32
  }
  func.func @transform_2(%arg0: i32) -> (i32, i32) {
    %c0_i32 = arith.constant 0 : i32
    %c0_i32_0 = arith.constant 0 : i32
    return %arg0, %c0_i32 : i32, i32
  }
  func.func @transform_3(%arg0: i32) -> (i32, i32) {
    %c0_i32 = arith.constant 0 : i32
    %c0_i32_0 = arith.constant 0 : i32
    return %arg0, %c0_i32 : i32, i32
  }
  func.func @transform_4(%arg0: i32) -> (i32, i32, i32) {
    %c0_i32 = arith.constant 0 : i32
    %c0_i32_0 = arith.constant 0 : i32
    %c0_i32_1 = arith.constant 0 : i32
    return %arg0, %c0_i32, %c0_i32_0 : i32, i32, i32
  }
}

module attributes {stable_mosaic.version = 11 : i64} {
  func.func @_conv3x3_kernel(%arg0: i32, %arg1: memref<1x8x8x128xf32, #tpu.memory_space<vmem>>, %arg2: memref<2x128xf32, #tpu.memory_space<vmem>>, %arg3: memref<9x128x128xf32, #tpu.memory_space<vmem>>, %arg4: memref<1x8x8x128xf32, #tpu.memory_space<vmem>>, %arg5: memref<1x2x128xf32, #tpu.memory_space<vmem>>, %arg6: memref<10x10x128xf32, #tpu.memory_space<vmem>>) attributes {dimension_semantics = [#tpu.dimension_semantics<parallel>], iteration_bounds = array<i64: 2>, scalar_prefetch = 0 : i64, scratch_operands = 1 : i64, tpu.core_type = #tpu.core_type<tc>, window_params = [{transform_indices = @transform_0, window_bounds = array<i64: 1, 8, 8, 128>}, {pipeline_mode = #tpu.pipeline_mode<synchronous>, transform_indices = @transform_1, window_bounds = array<i64: 2, 128>}, {pipeline_mode = #tpu.pipeline_mode<synchronous>, transform_indices = @transform_2, window_bounds = array<i64: 9, 128, 128>}, {transform_indices = @transform_3, window_bounds = array<i64: 1, 8, 8, 128>}, {transform_indices = @transform_4, window_bounds = array<i64: 1, 2, 128>}]} {
    %c0 = arith.constant 0 : index
    %c0_0 = arith.constant 0 : index
    %0 = vector.load %arg2[%c0, %c0_0] : memref<2x128xf32, #tpu.memory_space<vmem>>, vector<1x128xf32>
    %c1 = arith.constant 1 : index
    %c0_1 = arith.constant 0 : index
    %1 = vector.load %arg2[%c1, %c0_1] : memref<2x128xf32, #tpu.memory_space<vmem>>, vector<1x128xf32>
    %c0_2 = arith.constant 0 : index
    %c0_3 = arith.constant 0 : index
    %c0_4 = arith.constant 0 : index
    %c0_5 = arith.constant 0 : index
    %2 = vector.load %arg1[%c0_2, %c0_3, %c0_4, %c0_5] : memref<1x8x8x128xf32, #tpu.memory_space<vmem>>, vector<1x8x8x128xf32>
    %3 = vector.shape_cast %2 : vector<1x8x8x128xf32> to vector<8x8x128xf32>
    %4 = vector.shape_cast %0 : vector<1x128xf32> to vector<1x1x128xf32>
    %5 = vector.broadcast %4 : vector<1x1x128xf32> to vector<8x8x128xf32>
    %6 = arith.mulf %3, %5 : vector<8x8x128xf32>
    %7 = vector.shape_cast %1 : vector<1x128xf32> to vector<1x1x128xf32>
    %8 = vector.broadcast %7 : vector<1x1x128xf32> to vector<8x8x128xf32>
    %9 = arith.addf %6, %8 : vector<8x8x128xf32>
    %cst = arith.constant 0.000000e+00 : f32
    %10 = vector.broadcast %cst : f32 to vector<8x8x128xf32>
    %11 = arith.maximumf %9, %10 : vector<8x8x128xf32>
    %cst_6 = arith.constant 0.000000e+00 : f32
    %12 = vector.broadcast %cst_6 : f32 to vector<10x10x128xf32>
    %c0_7 = arith.constant 0 : index
    %c0_8 = arith.constant 0 : index
    %c0_9 = arith.constant 0 : index
    %13 = vector.load %arg6[%c0_7, %c0_8, %c0_9] : memref<10x10x128xf32, #tpu.memory_space<vmem>>, vector<10x10x128xf32>
    tpu.vector_store %arg6[%c0_7, %c0_8, %c0_9], %12 {strides = array<i32>} : memref<10x10x128xf32, #tpu.memory_space<vmem>>, vector<10x10x128xf32>,
    %c1_10 = arith.constant 1 : index
    %c1_11 = arith.constant 1 : index
    %c0_12 = arith.constant 0 : index
    %14 = vector.load %arg6[%c1_10, %c1_11, %c0_12] : memref<10x10x128xf32, #tpu.memory_space<vmem>>, vector<8x8x128xf32>
    tpu.vector_store %arg6[%c1_10, %c1_11, %c0_12], %11 {strides = array<i32>} : memref<10x10x128xf32, #tpu.memory_space<vmem>>, vector<8x8x128xf32>,
    %cst_13 = arith.constant 0.000000e+00 : f32
    %15 = vector.broadcast %cst_13 : f32 to vector<64x128xf32>
    %c0_14 = arith.constant 0 : index
    %c0_15 = arith.constant 0 : index
    %c0_16 = arith.constant 0 : index
    %16 = vector.load %arg6[%c0_14, %c0_15, %c0_16] : memref<10x10x128xf32, #tpu.memory_space<vmem>>, vector<8x8x128xf32>
    %17 = vector.shape_cast %16 : vector<8x8x128xf32> to vector<64x128xf32>
    %c0_17 = arith.constant 0 : index
    %c0_18 = arith.constant 0 : index
    %c0_19 = arith.constant 0 : index
    %18 = vector.load %arg3[%c0_17, %c0_18, %c0_19] : memref<9x128x128xf32, #tpu.memory_space<vmem>>, vector<1x128x128xf32>
    %19 = vector.shape_cast %18 : vector<1x128x128xf32> to vector<128x128xf32>
    %cst_20 = arith.constant dense<0.000000e+00> : vector<64x128xf32>
    %20 = tpu.matmul %17, %19, %cst_20 {dimension_numbers = #tpu.dot_dimension_numbers<[1], [0], [0], [1], [0, 0, 1, 1], [], []>} : vector<64x128xf32>, vector<128x128xf32>, vector<64x128xf32> -> vector<64x128xf32>
    %21 = arith.addf %15, %20 : vector<64x128xf32>
    %c0_21 = arith.constant 0 : index
    %c1_22 = arith.constant 1 : index
    %c0_23 = arith.constant 0 : index
    %22 = vector.load %arg6[%c0_21, %c1_22, %c0_23] : memref<10x10x128xf32, #tpu.memory_space<vmem>>, vector<8x8x128xf32>
    %23 = vector.shape_cast %22 : vector<8x8x128xf32> to vector<64x128xf32>
    %c1_24 = arith.constant 1 : index
    %c0_25 = arith.constant 0 : index
    %c0_26 = arith.constant 0 : index
    %24 = vector.load %arg3[%c1_24, %c0_25, %c0_26] : memref<9x128x128xf32, #tpu.memory_space<vmem>>, vector<1x128x128xf32>
    %25 = vector.shape_cast %24 : vector<1x128x128xf32> to vector<128x128xf32>
    %cst_27 = arith.constant dense<0.000000e+00> : vector<64x128xf32>
    %26 = tpu.matmul %23, %25, %cst_27 {dimension_numbers = #tpu.dot_dimension_numbers<[1], [0], [0], [1], [0, 0, 1, 1], [], []>} : vector<64x128xf32>, vector<128x128xf32>, vector<64x128xf32> -> vector<64x128xf32>
    %27 = arith.addf %21, %26 : vector<64x128xf32>
    %c0_28 = arith.constant 0 : index
    %c2 = arith.constant 2 : index
    %c0_29 = arith.constant 0 : index
    %28 = vector.load %arg6[%c0_28, %c2, %c0_29] : memref<10x10x128xf32, #tpu.memory_space<vmem>>, vector<8x8x128xf32>
    %29 = vector.shape_cast %28 : vector<8x8x128xf32> to vector<64x128xf32>
    %c2_30 = arith.constant 2 : index
    %c0_31 = arith.constant 0 : index
    %c0_32 = arith.constant 0 : index
    %30 = vector.load %arg3[%c2_30, %c0_31, %c0_32] : memref<9x128x128xf32, #tpu.memory_space<vmem>>, vector<1x128x128xf32>
    %31 = vector.shape_cast %30 : vector<1x128x128xf32> to vector<128x128xf32>
    %cst_33 = arith.constant dense<0.000000e+00> : vector<64x128xf32>
    %32 = tpu.matmul %29, %31, %cst_33 {dimension_numbers = #tpu.dot_dimension_numbers<[1], [0], [0], [1], [0, 0, 1, 1], [], []>} : vector<64x128xf32>, vector<128x128xf32>, vector<64x128xf32> -> vector<64x128xf32>
    %33 = arith.addf %27, %32 : vector<64x128xf32>
    %c1_34 = arith.constant 1 : index
    %c0_35 = arith.constant 0 : index
    %c0_36 = arith.constant 0 : index
    %34 = vector.load %arg6[%c1_34, %c0_35, %c0_36] : memref<10x10x128xf32, #tpu.memory_space<vmem>>, vector<8x8x128xf32>
    %35 = vector.shape_cast %34 : vector<8x8x128xf32> to vector<64x128xf32>
    %c3 = arith.constant 3 : index
    %c0_37 = arith.constant 0 : index
    %c0_38 = arith.constant 0 : index
    %36 = vector.load %arg3[%c3, %c0_37, %c0_38] : memref<9x128x128xf32, #tpu.memory_space<vmem>>, vector<1x128x128xf32>
    %37 = vector.shape_cast %36 : vector<1x128x128xf32> to vector<128x128xf32>
    %cst_39 = arith.constant dense<0.000000e+00> : vector<64x128xf32>
    %38 = tpu.matmul %35, %37, %cst_39 {dimension_numbers = #tpu.dot_dimension_numbers<[1], [0], [0], [1], [0, 0, 1, 1], [], []>} : vector<64x128xf32>, vector<128x128xf32>, vector<64x128xf32> -> vector<64x128xf32>
    %39 = arith.addf %33, %38 : vector<64x128xf32>
    %c1_40 = arith.constant 1 : index
    %c1_41 = arith.constant 1 : index
    %c0_42 = arith.constant 0 : index
    %40 = vector.load %arg6[%c1_40, %c1_41, %c0_42] : memref<10x10x128xf32, #tpu.memory_space<vmem>>, vector<8x8x128xf32>
    %41 = vector.shape_cast %40 : vector<8x8x128xf32> to vector<64x128xf32>
    %c4 = arith.constant 4 : index
    %c0_43 = arith.constant 0 : index
    %c0_44 = arith.constant 0 : index
    %42 = vector.load %arg3[%c4, %c0_43, %c0_44] : memref<9x128x128xf32, #tpu.memory_space<vmem>>, vector<1x128x128xf32>
    %43 = vector.shape_cast %42 : vector<1x128x128xf32> to vector<128x128xf32>
    %cst_45 = arith.constant dense<0.000000e+00> : vector<64x128xf32>
    %44 = tpu.matmul %41, %43, %cst_45 {dimension_numbers = #tpu.dot_dimension_numbers<[1], [0], [0], [1], [0, 0, 1, 1], [], []>} : vector<64x128xf32>, vector<128x128xf32>, vector<64x128xf32> -> vector<64x128xf32>
    %45 = arith.addf %39, %44 : vector<64x128xf32>
    %c1_46 = arith.constant 1 : index
    %c2_47 = arith.constant 2 : index
    %c0_48 = arith.constant 0 : index
    %46 = vector.load %arg6[%c1_46, %c2_47, %c0_48] : memref<10x10x128xf32, #tpu.memory_space<vmem>>, vector<8x8x128xf32>
    %47 = vector.shape_cast %46 : vector<8x8x128xf32> to vector<64x128xf32>
    %c5 = arith.constant 5 : index
    %c0_49 = arith.constant 0 : index
    %c0_50 = arith.constant 0 : index
    %48 = vector.load %arg3[%c5, %c0_49, %c0_50] : memref<9x128x128xf32, #tpu.memory_space<vmem>>, vector<1x128x128xf32>
    %49 = vector.shape_cast %48 : vector<1x128x128xf32> to vector<128x128xf32>
    %cst_51 = arith.constant dense<0.000000e+00> : vector<64x128xf32>
    %50 = tpu.matmul %47, %49, %cst_51 {dimension_numbers = #tpu.dot_dimension_numbers<[1], [0], [0], [1], [0, 0, 1, 1], [], []>} : vector<64x128xf32>, vector<128x128xf32>, vector<64x128xf32> -> vector<64x128xf32>
    %51 = arith.addf %45, %50 : vector<64x128xf32>
    %c2_52 = arith.constant 2 : index
    %c0_53 = arith.constant 0 : index
    %c0_54 = arith.constant 0 : index
    %52 = vector.load %arg6[%c2_52, %c0_53, %c0_54] : memref<10x10x128xf32, #tpu.memory_space<vmem>>, vector<8x8x128xf32>
    %53 = vector.shape_cast %52 : vector<8x8x128xf32> to vector<64x128xf32>
    %c6 = arith.constant 6 : index
    %c0_55 = arith.constant 0 : index
    %c0_56 = arith.constant 0 : index
    %54 = vector.load %arg3[%c6, %c0_55, %c0_56] : memref<9x128x128xf32, #tpu.memory_space<vmem>>, vector<1x128x128xf32>
    %55 = vector.shape_cast %54 : vector<1x128x128xf32> to vector<128x128xf32>
    %cst_57 = arith.constant dense<0.000000e+00> : vector<64x128xf32>
    %56 = tpu.matmul %53, %55, %cst_57 {dimension_numbers = #tpu.dot_dimension_numbers<[1], [0], [0], [1], [0, 0, 1, 1], [], []>} : vector<64x128xf32>, vector<128x128xf32>, vector<64x128xf32> -> vector<64x128xf32>
    %57 = arith.addf %51, %56 : vector<64x128xf32>
    %c2_58 = arith.constant 2 : index
    %c1_59 = arith.constant 1 : index
    %c0_60 = arith.constant 0 : index
    %58 = vector.load %arg6[%c2_58, %c1_59, %c0_60] : memref<10x10x128xf32, #tpu.memory_space<vmem>>, vector<8x8x128xf32>
    %59 = vector.shape_cast %58 : vector<8x8x128xf32> to vector<64x128xf32>
    %c7 = arith.constant 7 : index
    %c0_61 = arith.constant 0 : index
    %c0_62 = arith.constant 0 : index
    %60 = vector.load %arg3[%c7, %c0_61, %c0_62] : memref<9x128x128xf32, #tpu.memory_space<vmem>>, vector<1x128x128xf32>
    %61 = vector.shape_cast %60 : vector<1x128x128xf32> to vector<128x128xf32>
    %cst_63 = arith.constant dense<0.000000e+00> : vector<64x128xf32>
    %62 = tpu.matmul %59, %61, %cst_63 {dimension_numbers = #tpu.dot_dimension_numbers<[1], [0], [0], [1], [0, 0, 1, 1], [], []>} : vector<64x128xf32>, vector<128x128xf32>, vector<64x128xf32> -> vector<64x128xf32>
    %63 = arith.addf %57, %62 : vector<64x128xf32>
    %c2_64 = arith.constant 2 : index
    %c2_65 = arith.constant 2 : index
    %c0_66 = arith.constant 0 : index
    %64 = vector.load %arg6[%c2_64, %c2_65, %c0_66] : memref<10x10x128xf32, #tpu.memory_space<vmem>>, vector<8x8x128xf32>
    %65 = vector.shape_cast %64 : vector<8x8x128xf32> to vector<64x128xf32>
    %c8 = arith.constant 8 : index
    %c0_67 = arith.constant 0 : index
    %c0_68 = arith.constant 0 : index
    %66 = vector.load %arg3[%c8, %c0_67, %c0_68] : memref<9x128x128xf32, #tpu.memory_space<vmem>>, vector<1x128x128xf32>
    %67 = vector.shape_cast %66 : vector<1x128x128xf32> to vector<128x128xf32>
    %cst_69 = arith.constant dense<0.000000e+00> : vector<64x128xf32>
    %68 = tpu.matmul %65, %67, %cst_69 {dimension_numbers = #tpu.dot_dimension_numbers<[1], [0], [0], [1], [0, 0, 1, 1], [], []>} : vector<64x128xf32>, vector<128x128xf32>, vector<64x128xf32> -> vector<64x128xf32>
    %69 = arith.addf %63, %68 : vector<64x128xf32>
    %70 = vector.shape_cast %69 : vector<64x128xf32> to vector<8x8x128xf32>
    %c0_70 = arith.constant 0 : index
    %c0_71 = arith.constant 0 : index
    %c0_72 = arith.constant 0 : index
    %c0_73 = arith.constant 0 : index
    %71 = vector.load %arg4[%c0_70, %c0_71, %c0_72, %c0_73] : memref<1x8x8x128xf32, #tpu.memory_space<vmem>>, vector<1x8x8x128xf32>
    %72 = vector.shape_cast %71 : vector<1x8x8x128xf32> to vector<8x8x128xf32>
    %73 = vector.shape_cast %70 : vector<8x8x128xf32> to vector<1x8x8x128xf32>
    tpu.vector_store %arg4[%c0_70, %c0_71, %c0_72, %c0_73], %73 {strides = array<i32>} : memref<1x8x8x128xf32, #tpu.memory_space<vmem>>, vector<1x8x8x128xf32>,
    %cst_74 = arith.constant dense<0.000000e+00> : vector<128xf32>
    %74 = vector.multi_reduction <add>, %69, %cst_74 [0] : vector<64x128xf32> to vector<128xf32>
    %75 = vector.shape_cast %74 : vector<128xf32> to vector<1x128xf32>
    %76 = arith.mulf %69, %69 : vector<64x128xf32>
    %cst_75 = arith.constant dense<0.000000e+00> : vector<128xf32>
    %77 = vector.multi_reduction <add>, %76, %cst_75 [0] : vector<64x128xf32> to vector<128xf32>
    %78 = vector.shape_cast %77 : vector<128xf32> to vector<1x128xf32>
    %79 = tpu.concatenate %75, %78 in 0 : vector<1x128xf32>, vector<1x128xf32> -> vector<2x128xf32>
    %c0_76 = arith.constant 0 : index
    %c0_77 = arith.constant 0 : index
    %c0_78 = arith.constant 0 : index
    %80 = vector.load %arg5[%c0_76, %c0_77, %c0_78] : memref<1x2x128xf32, #tpu.memory_space<vmem>>, vector<1x2x128xf32>
    %81 = vector.shape_cast %80 : vector<1x2x128xf32> to vector<2x128xf32>
    %82 = vector.shape_cast %79 : vector<2x128xf32> to vector<1x2x128xf32>
    tpu.vector_store %arg5[%c0_76, %c0_77, %c0_78], %82 {strides = array<i32>} : memref<1x2x128xf32, #tpu.memory_space<vmem>>, vector<1x2x128xf32>,
    return
  }
  func.func @transform_0(%arg0: i32) -> (i32, i32, i32, i32) {
    %c0_i32 = arith.constant 0 : i32
    %c0_i32_0 = arith.constant 0 : i32
    %c0_i32_1 = arith.constant 0 : i32
    %c0_i32_2 = arith.constant 0 : i32
    return %arg0, %c0_i32, %c0_i32_0, %c0_i32_1 : i32, i32, i32, i32
  }
  func.func @transform_1(%arg0: i32) -> (i32, i32) {
    %c0_i32 = arith.constant 0 : i32
    %c0_i32_0 = arith.constant 0 : i32
    %c0_i32_1 = arith.constant 0 : i32
    return %c0_i32, %c0_i32_0 : i32, i32
  }
  func.func @transform_2(%arg0: i32) -> (i32, i32, i32) {
    %c0_i32 = arith.constant 0 : i32
    %c0_i32_0 = arith.constant 0 : i32
    %c0_i32_1 = arith.constant 0 : i32
    %c0_i32_2 = arith.constant 0 : i32
    return %c0_i32, %c0_i32_0, %c0_i32_1 : i32, i32, i32
  }
  func.func @transform_3(%arg0: i32) -> (i32, i32, i32, i32) {
    %c0_i32 = arith.constant 0 : i32
    %c0_i32_0 = arith.constant 0 : i32
    %c0_i32_1 = arith.constant 0 : i32
    %c0_i32_2 = arith.constant 0 : i32
    return %arg0, %c0_i32, %c0_i32_0, %c0_i32_1 : i32, i32, i32, i32
  }
  func.func @transform_4(%arg0: i32) -> (i32, i32, i32) {
    %c0_i32 = arith.constant 0 : i32
    %c0_i32_0 = arith.constant 0 : i32
    %c0_i32_1 = arith.constant 0 : i32
    return %arg0, %c0_i32, %c0_i32_0 : i32, i32, i32
  }
}

module attributes {stable_mosaic.version = 11 : i64} {
  func.func @_conv1x1_bn_relu_kernel(%arg0: i32, %arg1: memref<128x128xf32, #tpu.memory_space<vmem>>, %arg2: memref<2x128xf32, #tpu.memory_space<vmem>>, %arg3: memref<128x128xf32, #tpu.memory_space<vmem>>, %arg4: memref<128x128xf32, #tpu.memory_space<vmem>>, %arg5: memref<1x2x128xf32, #tpu.memory_space<vmem>>) attributes {dimension_semantics = [#tpu.dimension_semantics<parallel>], iteration_bounds = array<i64: 1>, scalar_prefetch = 0 : i64, scratch_operands = 0 : i64, tpu.core_type = #tpu.core_type<tc>, window_params = [{transform_indices = @transform_0, window_bounds = array<i64: 128, 128>}, {pipeline_mode = #tpu.pipeline_mode<synchronous>, transform_indices = @transform_1, window_bounds = array<i64: 2, 128>}, {pipeline_mode = #tpu.pipeline_mode<synchronous>, transform_indices = @transform_2, window_bounds = array<i64: 128, 128>}, {transform_indices = @transform_3, window_bounds = array<i64: 128, 128>}, {transform_indices = @transform_4, window_bounds = array<i64: 1, 2, 128>}]} {
    %c0 = arith.constant 0 : index
    %c0_0 = arith.constant 0 : index
    %0 = vector.load %arg2[%c0, %c0_0] : memref<2x128xf32, #tpu.memory_space<vmem>>, vector<1x128xf32>
    %c1 = arith.constant 1 : index
    %c0_1 = arith.constant 0 : index
    %1 = vector.load %arg2[%c1, %c0_1] : memref<2x128xf32, #tpu.memory_space<vmem>>, vector<1x128xf32>
    %c0_2 = arith.constant 0 : index
    %c0_3 = arith.constant 0 : index
    %2 = vector.load %arg1[%c0_2, %c0_3] : memref<128x128xf32, #tpu.memory_space<vmem>>, vector<128x128xf32>
    %3 = vector.broadcast %0 : vector<1x128xf32> to vector<128x128xf32>
    %4 = arith.mulf %2, %3 : vector<128x128xf32>
    %5 = vector.broadcast %1 : vector<1x128xf32> to vector<128x128xf32>
    %6 = arith.addf %4, %5 : vector<128x128xf32>
    %cst = arith.constant 0.000000e+00 : f32
    %7 = vector.broadcast %cst : f32 to vector<128x128xf32>
    %8 = arith.maximumf %6, %7 : vector<128x128xf32>
    %9 = tpu.iota {dimensions = array<i32: 0>} : vector<128x1xi32>
    %c128_i32 = arith.constant 128 : i32
    %10 = arith.muli %arg0, %c128_i32 : i32
    %11 = vector.broadcast %10 : i32 to vector<128x1xi32>
    %12 = arith.addi %9, %11 : vector<128x1xi32>
    %c128_i32_4 = arith.constant 128 : i32
    %13 = vector.broadcast %c128_i32_4 : i32 to vector<128x1xi32>
    %14 = arith.cmpi slt, %12, %13 : vector<128x1xi32>
    %cst_5 = arith.constant 0.000000e+00 : f32
    %15 = vector.shape_cast %14 : vector<128x1xi1> to vector<128x1xi1>
    %16 = vector.broadcast %15 : vector<128x1xi1> to vector<128x128xi1>
    %17 = vector.broadcast %cst_5 : f32 to vector<128x128xf32>
    %18 = arith.select %16, %8, %17 : vector<128x128xi1>, vector<128x128xf32>
    %c0_6 = arith.constant 0 : index
    %c0_7 = arith.constant 0 : index
    %19 = vector.load %arg3[%c0_6, %c0_7] : memref<128x128xf32, #tpu.memory_space<vmem>>, vector<128x128xf32>
    %cst_8 = arith.constant dense<0.000000e+00> : vector<128x128xf32>
    %20 = tpu.matmul %18, %19, %cst_8 {dimension_numbers = #tpu.dot_dimension_numbers<[1], [0], [0], [1], [0, 0, 1, 1], [], []>} : vector<128x128xf32>, vector<128x128xf32>, vector<128x128xf32> -> vector<128x128xf32>
    %c0_9 = arith.constant 0 : index
    %c0_10 = arith.constant 0 : index
    %21 = vector.load %arg4[%c0_9, %c0_10] : memref<128x128xf32, #tpu.memory_space<vmem>>, vector<128x128xf32>
    tpu.vector_store %arg4[%c0_9, %c0_10], %20 {strides = array<i32>} : memref<128x128xf32, #tpu.memory_space<vmem>>, vector<128x128xf32>,
    %cst_11 = arith.constant dense<0.000000e+00> : vector<128xf32>
    %22 = vector.multi_reduction <add>, %20, %cst_11 [0] : vector<128x128xf32> to vector<128xf32>
    %23 = vector.shape_cast %22 : vector<128xf32> to vector<1x128xf32>
    %24 = arith.mulf %20, %20 : vector<128x128xf32>
    %cst_12 = arith.constant dense<0.000000e+00> : vector<128xf32>
    %25 = vector.multi_reduction <add>, %24, %cst_12 [0] : vector<128x128xf32> to vector<128xf32>
    %26 = vector.shape_cast %25 : vector<128xf32> to vector<1x128xf32>
    %27 = tpu.concatenate %23, %26 in 0 : vector<1x128xf32>, vector<1x128xf32> -> vector<2x128xf32>
    %c0_13 = arith.constant 0 : index
    %c0_14 = arith.constant 0 : index
    %c0_15 = arith.constant 0 : index
    %28 = vector.load %arg5[%c0_13, %c0_14, %c0_15] : memref<1x2x128xf32, #tpu.memory_space<vmem>>, vector<1x2x128xf32>
    %29 = vector.shape_cast %28 : vector<1x2x128xf32> to vector<2x128xf32>
    %30 = vector.shape_cast %27 : vector<2x128xf32> to vector<1x2x128xf32>
    tpu.vector_store %arg5[%c0_13, %c0_14, %c0_15], %30 {strides = array<i32>} : memref<1x2x128xf32, #tpu.memory_space<vmem>>, vector<1x2x128xf32>,
    return
  }
  func.func @transform_0(%arg0: i32) -> (i32, i32) {
    %c0_i32 = arith.constant 0 : i32
    %c0_i32_0 = arith.constant 0 : i32
    return %arg0, %c0_i32 : i32, i32
  }
  func.func @transform_1(%arg0: i32) -> (i32, i32) {
    %c0_i32 = arith.constant 0 : i32
    %c0_i32_0 = arith.constant 0 : i32
    %c0_i32_1 = arith.constant 0 : i32
    return %c0_i32, %c0_i32_0 : i32, i32
  }
  func.func @transform_2(%arg0: i32) -> (i32, i32) {
    %c0_i32 = arith.constant 0 : i32
    %c0_i32_0 = arith.constant 0 : i32
    %c0_i32_1 = arith.constant 0 : i32
    return %c0_i32, %c0_i32_0 : i32, i32
  }
  func.func @transform_3(%arg0: i32) -> (i32, i32) {
    %c0_i32 = arith.constant 0 : i32
    %c0_i32_0 = arith.constant 0 : i32
    return %arg0, %c0_i32 : i32, i32
  }
  func.func @transform_4(%arg0: i32) -> (i32, i32, i32) {
    %c0_i32 = arith.constant 0 : i32
    %c0_i32_0 = arith.constant 0 : i32
    %c0_i32_1 = arith.constant 0 : i32
    return %arg0, %c0_i32, %c0_i32_0 : i32, i32, i32
  }
}

module attributes {stable_mosaic.version = 11 : i64} {
  func.func @_bn_add_relu_kernel(%arg0: i32, %arg1: memref<128x128xf32, #tpu.memory_space<vmem>>, %arg2: memref<128x128xf32, #tpu.memory_space<vmem>>, %arg3: memref<4x128xf32, #tpu.memory_space<vmem>>, %arg4: memref<128x128xf32, #tpu.memory_space<vmem>>) attributes {dimension_semantics = [#tpu.dimension_semantics<parallel>], iteration_bounds = array<i64: 1>, scalar_prefetch = 0 : i64, scratch_operands = 0 : i64, tpu.core_type = #tpu.core_type<tc>, window_params = [{transform_indices = @transform_0, window_bounds = array<i64: 128, 128>}, {transform_indices = @transform_1, window_bounds = array<i64: 128, 128>}, {pipeline_mode = #tpu.pipeline_mode<synchronous>, transform_indices = @transform_2, window_bounds = array<i64: 4, 128>}, {transform_indices = @transform_3, window_bounds = array<i64: 128, 128>}]} {
    %c0 = arith.constant 0 : index
    %c0_0 = arith.constant 0 : index
    %0 = vector.load %arg1[%c0, %c0_0] : memref<128x128xf32, #tpu.memory_space<vmem>>, vector<128x128xf32>
    %c0_1 = arith.constant 0 : index
    %c0_2 = arith.constant 0 : index
    %1 = vector.load %arg3[%c0_1, %c0_2] : memref<4x128xf32, #tpu.memory_space<vmem>>, vector<1x128xf32>
    %2 = vector.broadcast %1 : vector<1x128xf32> to vector<128x128xf32>
    %3 = arith.mulf %0, %2 : vector<128x128xf32>
    %c1 = arith.constant 1 : index
    %c0_3 = arith.constant 0 : index
    %4 = vector.load %arg3[%c1, %c0_3] : memref<4x128xf32, #tpu.memory_space<vmem>>, vector<1x128xf32>
    %5 = vector.broadcast %4 : vector<1x128xf32> to vector<128x128xf32>
    %6 = arith.addf %3, %5 : vector<128x128xf32>
    %c0_4 = arith.constant 0 : index
    %c0_5 = arith.constant 0 : index
    %7 = vector.load %arg2[%c0_4, %c0_5] : memref<128x128xf32, #tpu.memory_space<vmem>>, vector<128x128xf32>
    %c2 = arith.constant 2 : index
    %c0_6 = arith.constant 0 : index
    %8 = vector.load %arg3[%c2, %c0_6] : memref<4x128xf32, #tpu.memory_space<vmem>>, vector<1x128xf32>
    %9 = vector.broadcast %8 : vector<1x128xf32> to vector<128x128xf32>
    %10 = arith.mulf %7, %9 : vector<128x128xf32>
    %11 = arith.addf %6, %10 : vector<128x128xf32>
    %c3 = arith.constant 3 : index
    %c0_7 = arith.constant 0 : index
    %12 = vector.load %arg3[%c3, %c0_7] : memref<4x128xf32, #tpu.memory_space<vmem>>, vector<1x128xf32>
    %13 = vector.broadcast %12 : vector<1x128xf32> to vector<128x128xf32>
    %14 = arith.addf %11, %13 : vector<128x128xf32>
    %cst = arith.constant 0.000000e+00 : f32
    %15 = vector.broadcast %cst : f32 to vector<128x128xf32>
    %16 = arith.maximumf %14, %15 : vector<128x128xf32>
    %c0_8 = arith.constant 0 : index
    %c0_9 = arith.constant 0 : index
    %17 = vector.load %arg4[%c0_8, %c0_9] : memref<128x128xf32, #tpu.memory_space<vmem>>, vector<128x128xf32>
    tpu.vector_store %arg4[%c0_8, %c0_9], %16 {strides = array<i32>} : memref<128x128xf32, #tpu.memory_space<vmem>>, vector<128x128xf32>,
    return
  }
  func.func @transform_0(%arg0: i32) -> (i32, i32) {
    %c0_i32 = arith.constant 0 : i32
    %c0_i32_0 = arith.constant 0 : i32
    return %arg0, %c0_i32 : i32, i32
  }
  func.func @transform_1(%arg0: i32) -> (i32, i32) {
    %c0_i32 = arith.constant 0 : i32
    %c0_i32_0 = arith.constant 0 : i32
    return %arg0, %c0_i32 : i32, i32
  }
  func.func @transform_2(%arg0: i32) -> (i32, i32) {
    %c0_i32 = arith.constant 0 : i32
    %c0_i32_0 = arith.constant 0 : i32
    %c0_i32_1 = arith.constant 0 : i32
    return %c0_i32, %c0_i32_0 : i32, i32
  }
  func.func @transform_3(%arg0: i32) -> (i32, i32) {
    %c0_i32 = arith.constant 0 : i32
    %c0_i32_0 = arith.constant 0 : i32
    return %arg0, %c0_i32 : i32, i32
  }
}

</mosaic_0001>

<llo_original>
// kernel: conv_block_forward.4
$region0: #{conv_block_forward.4}
  #allocation0 [shape = 'u32[]', space=smem, size = 0x4, offset = 0x4, fixed_abs, tag = 'smem constant byte address 0x4 - core index']
  #allocation1 [shape = 'u32[72,128]{1,0:T(1,128)}', space=vmem, size = 0x9000, scoped, tag = 'internal scratch']
  %s0 = inlined_call_operand.vmem [shape: f32[128,128], index: 0, kind: input, shape index: {}]
  %s1 = inlined_call_operand.vmem [shape: f32[128,256], index: 1, kind: input, shape index: {}]
  %s2 = inlined_call_operand.vmem [shape: f32[128,128], index: 2, kind: output, shape index: {0}]
  %s3 = inlined_call_operand.vmem [shape: f32[128,128], index: 3, kind: output, shape index: {1}]
  %s4 = inlined_call_operand.vmem [shape: f32[1,2,256], index: 4, kind: output, shape index: {2}]
  %5 = xla_tuple %s2, %s3, %s4
  %s6 = sld [smem:[#allocation0]]
  $region34: #{conv_block_forward.4} parent=0
    _
  %s8 = ssub.s32 1, %s6
  %s9 = scalar_select 0, %s8, %s6
  // Predicated region
  $region2: #{conv_block_forward.4} parent=0 // pred_check
    _
  $region3: #{conv_block_forward.4} parent=0 // pred_check_branch
    %11 = sbr.rel (0) target = $region5
  $region4: #{conv_block_forward.4} parent=0 // pred_region
    _
  $region5: #{conv_block_forward.4} parent=0 // pred_fallthru
    _
  // Predicated region
  $region6: #{conv_block_forward.4} parent=0 // pred_check
    _
  $region7: #{conv_block_forward.4} parent=0 // pred_check_branch
    %13 = sbr.rel (0) target = $region9
  $region8: #{conv_block_forward.4} parent=0 // pred_region
    _
  $region9: #{conv_block_forward.4} parent=0 // pred_fallthru
    _
  %v14 = vld [vmem:[%s0] sm:$0xff]
  %v15 = vld [vmem:[%s0 + $0x8] sm:$0xff]
  %v16 = vld [vmem:[%s0 + $0x10] sm:$0xff]
  %v17 = vld [vmem:[%s0 + $0x18] sm:$0xff]
  %v18 = vld [vmem:[%s0 + $0x20] sm:$0xff]
  %v19 = vld [vmem:[%s0 + $0x28] sm:$0xff]
  %v20 = vld [vmem:[%s0 + $0x30] sm:$0xff]
  %v21 = vld [vmem:[%s0 + $0x38] sm:$0xff]
  %v22 = vld [vmem:[%s0 + $0x40] sm:$0xff]
  %v23 = vld [vmem:[%s0 + $0x48] sm:$0xff]
  %v24 = vld [vmem:[%s0 + $0x50] sm:$0xff]
  %v25 = vld [vmem:[%s0 + $0x58] sm:$0xff]
  %v26 = vld [vmem:[%s0 + $0x60] sm:$0xff]
  %v27 = vld [vmem:[%s0 + $0x68] sm:$0xff]
  %v28 = vld [vmem:[%s0 + $0x70] sm:$0xff]
  %v29 = vld [vmem:[%s0 + $0x78] sm:$0xff]
  %v30 = vld [vmem:[%s1] sm:$0xff]
  %v31 = vld [vmem:[%s1 + $0x8] sm:$0xff]
  %v32 = vld [vmem:[%s1 + $0x10] sm:$0xff]
  %v33 = vld [vmem:[%s1 + $0x18] sm:$0xff]
  %v34 = vld [vmem:[%s1 + $0x20] sm:$0xff]
  %v35 = vld [vmem:[%s1 + $0x28] sm:$0xff]
  %v36 = vld [vmem:[%s1 + $0x30] sm:$0xff]
  %v37 = vld [vmem:[%s1 + $0x38] sm:$0xff]
  %v38 = vld [vmem:[%s1 + $0x40] sm:$0xff]
  %v39 = vld [vmem:[%s1 + $0x48] sm:$0xff]
  %v40 = vld [vmem:[%s1 + $0x50] sm:$0xff]
  %v41 = vld [vmem:[%s1 + $0x58] sm:$0xff]
  %v42 = vld [vmem:[%s1 + $0x60] sm:$0xff]
  %v43 = vld [vmem:[%s1 + $0x68] sm:$0xff]
  %v44 = vld [vmem:[%s1 + $0x70] sm:$0xff]
  %v45 = vld [vmem:[%s1 + $0x78] sm:$0xff]
  %v46 = vld [vmem:[%s1 + $0x80] sm:$0xff]
  %v47 = vld [vmem:[%s1 + $0x88] sm:$0xff]
  %v48 = vld [vmem:[%s1 + $0x90] sm:$0xff]
  %v49 = vld [vmem:[%s1 + $0x98] sm:$0xff]
  %v50 = vld [vmem:[%s1 + $0xa0] sm:$0xff]
  %v51 = vld [vmem:[%s1 + $0xa8] sm:$0xff]
  %v52 = vld [vmem:[%s1 + $0xb0] sm:$0xff]
  %v53 = vld [vmem:[%s1 + $0xb8] sm:$0xff]
  %v54 = vld [vmem:[%s1 + $0xc0] sm:$0xff]
  %v55 = vld [vmem:[%s1 + $0xc8] sm:$0xff]
  %v56 = vld [vmem:[%s1 + $0xd0] sm:$0xff]
  %v57 = vld [vmem:[%s1 + $0xd8] sm:$0xff]
  %v58 = vld [vmem:[%s1 + $0xe0] sm:$0xff]
  %v59 = vld [vmem:[%s1 + $0xe8] sm:$0xff]
  %v60 = vld [vmem:[%s1 + $0xf0] sm:$0xff]
  %v61 = vld [vmem:[%s1 + $0xf8] sm:$0xff]
  %62 = vmatpush.msra.mxu0 %v60
  %63 = vmatpush.msra.mxu0 %v58
  %64 = vmatpush.msra.mxu0 %v56
  %65 = vmatpush.msra.mxu0 %v54
  %66 = vmatpush.msra.mxu0 %v52
  %67 = vmatpush.msra.mxu0 %v50
  %68 = vmatpush.msra.mxu0 %v48
  %69 = vmatpush.msra.mxu0 %v46
  %70 = vmatpush.msra.mxu0 %v44
  %71 = vmatpush.msra.mxu0 %v42
  %72 = vmatpush.msra.mxu0 %v40
  %73 = vmatpush.msra.mxu0 %v38
  %74 = vmatpush.msra.mxu0 %v36
  %75 = vmatpush.msra.mxu0 %v34
  %76 = vmatpush.msra.mxu0 %v32
  %77 = vmatpush.msra.mxu0 %v30
  %78 = vmatmul.f32.gmra.mxu0 %v14
  %v79 = vpop.f32.mrf.mxu0
  %v80 = vadd.f32 0.0, %v79
  %81 = vmatmul.f32.gmra.mxu0 %v15
  %v82 = vpop.f32.mrf.mxu0
  %v83 = vadd.f32 0.0, %v82
  %84 = vmatmul.f32.gmra.mxu0 %v16
  %v85 = vpop.f32.mrf.mxu0
  %v86 = vadd.f32 0.0, %v85
  %87 = vmatmul.f32.gmra.mxu0 %v17
  %v88 = vpop.f32.mrf.mxu0
  %v89 = vadd.f32 0.0, %v88
  %90 = vmatmul.f32.gmra.mxu0 %v18
  %v91 = vpop.f32.mrf.mxu0
  %v92 = vadd.f32 0.0, %v91
  %93 = vmatmul.f32.gmra.mxu0 %v19
  %v94 = vpop.f32.mrf.mxu0
  %v95 = vadd.f32 0.0, %v94
  %96 = vmatmul.f32.gmra.mxu0 %v20
  %v97 = vpop.f32.mrf.mxu0
  %v98 = vadd.f32 0.0, %v97
  %99 = vmatmul.f32.gmra.mxu0 %v21
  %v100 = vpop.f32.mrf.mxu0
  %v101 = vadd.f32 0.0, %v100
  %102 = vmatmul.f32.gmra.mxu0 %v22
  %v103 = vpop.f32.mrf.mxu0
  %v104 = vadd.f32 0.0, %v103
  %105 = vmatmul.f32.gmra.mxu0 %v23
  %v106 = vpop.f32.mrf.mxu0
  %v107 = vadd.f32 0.0, %v106
  %108 = vmatmul.f32.gmra.mxu0 %v24
  %v109 = vpop.f32.mrf.mxu0
  %v110 = vadd.f32 0.0, %v109
  %111 = vmatmul.f32.gmra.mxu0 %v25
  %v112 = vpop.f32.mrf.mxu0
  %v113 = vadd.f32 0.0, %v112
  %114 = vmatmul.f32.gmra.mxu0 %v26
  %v115 = vpop.f32.mrf.mxu0
  %v116 = vadd.f32 0.0, %v115
  %117 = vmatmul.f32.gmra.mxu0 %v27
  %v118 = vpop.f32.mrf.mxu0
  %v119 = vadd.f32 0.0, %v118
  %120 = vmatmul.f32.gmra.mxu0 %v28
  %v121 = vpop.f32.mrf.mxu0
  %v122 = vadd.f32 0.0, %v121
  %123 = vmatmul.f32.gmra.mxu0 %v29
  %v124 = vpop.f32.mrf.mxu0
  %v125 = vadd.f32 0.0, %v124
  %126 = vdwg.mxu0
  %127 = vmatpush.msra.mxu0 %v61
  %128 = vmatpush.msra.mxu0 %v59
  %129 = vmatpush.msra.mxu0 %v57
  %130 = vmatpush.msra.mxu0 %v55
  %131 = vmatpush.msra.mxu0 %v53
  %132 = vmatpush.msra.mxu0 %v51
  %133 = vmatpush.msra.mxu0 %v49
  %134 = vmatpush.msra.mxu0 %v47
  %135 = vmatpush.msra.mxu0 %v45
  %136 = vmatpush.msra.mxu0 %v43
  %137 = vmatpush.msra.mxu0 %v41
  %138 = vmatpush.msra.mxu0 %v39
  %139 = vmatpush.msra.mxu0 %v37
  %140 = vmatpush.msra.mxu0 %v35
  %141 = vmatpush.msra.mxu0 %v33
  %142 = vmatpush.msra.mxu0 %v31
  %143 = vmatmul.f32.gmra.mxu0 %v14
  %v144 = vpop.f32.mrf.mxu0
  %v145 = vadd.f32 0.0, %v144
  %146 = vmatmul.f32.gmra.mxu0 %v15
  %v147 = vpop.f32.mrf.mxu0
  %v148 = vadd.f32 0.0, %v147
  %149 = vmatmul.f32.gmra.mxu0 %v16
  %v150 = vpop.f32.mrf.mxu0
  %v151 = vadd.f32 0.0, %v150
  %152 = vmatmul.f32.gmra.mxu0 %v17
  %v153 = vpop.f32.mrf.mxu0
  %v154 = vadd.f32 0.0, %v153
  %155 = vmatmul.f32.gmra.mxu0 %v18
  %v156 = vpop.f32.mrf.mxu0
  %v157 = vadd.f32 0.0, %v156
  %158 = vmatmul.f32.gmra.mxu0 %v19
  %v159 = vpop.f32.mrf.mxu0
  %v160 = vadd.f32 0.0, %v159
  %161 = vmatmul.f32.gmra.mxu0 %v20
  %v162 = vpop.f32.mrf.mxu0
  %v163 = vadd.f32 0.0, %v162
  %164 = vmatmul.f32.gmra.mxu0 %v21
  %v165 = vpop.f32.mrf.mxu0
  %v166 = vadd.f32 0.0, %v165
  %167 = vmatmul.f32.gmra.mxu0 %v22
  %v168 = vpop.f32.mrf.mxu0
  %v169 = vadd.f32 0.0, %v168
  %170 = vmatmul.f32.gmra.mxu0 %v23
  %v171 = vpop.f32.mrf.mxu0
  %v172 = vadd.f32 0.0, %v171
  %173 = vmatmul.f32.gmra.mxu0 %v24
  %v174 = vpop.f32.mrf.mxu0
  %v175 = vadd.f32 0.0, %v174
  %176 = vmatmul.f32.gmra.mxu0 %v25
  %v177 = vpop.f32.mrf.mxu0
  %v178 = vadd.f32 0.0, %v177
  %179 = vmatmul.f32.gmra.mxu0 %v26
  %v180 = vpop.f32.mrf.mxu0
  %v181 = vadd.f32 0.0, %v180
  %182 = vmatmul.f32.gmra.mxu0 %v27
  %v183 = vpop.f32.mrf.mxu0
  %v184 = vadd.f32 0.0, %v183
  %185 = vmatmul.f32.gmra.mxu0 %v28
  %v186 = vpop.f32.mrf.mxu0
  %v187 = vadd.f32 0.0, %v186
  %188 = vmatmul.f32.gmra.mxu0 %v29
  %v189 = vpop.f32.mrf.mxu0
  %v190 = vadd.f32 0.0, %v189
  %191 = vdwg.mxu0
  %192 = vst [vmem:[%s2] sm:$0xff] %v80
  %193 = vst [vmem:[%s2 + $0x8] sm:$0xff] %v83
  %194 = vst [vmem:[%s2 + $0x10] sm:$0xff] %v86
  %195 = vst [vmem:[%s2 + $0x18] sm:$0xff] %v89
  %196 = vst [vmem:[%s2 + $0x20] sm:$0xff] %v92
  %197 = vst [vmem:[%s2 + $0x28] sm:$0xff] %v95
  %198 = vst [vmem:[%s2 + $0x30] sm:$0xff] %v98
  %199 = vst [vmem:[%s2 + $0x38] sm:$0xff] %v101
  %200 = vst [vmem:[%s2 + $0x40] sm:$0xff] %v104
  %201 = vst [vmem:[%s2 + $0x48] sm:$0xff] %v107
  %202 = vst [vmem:[%s2 + $0x50] sm:$0xff] %v110
  %203 = vst [vmem:[%s2 + $0x58] sm:$0xff] %v113
  %204 = vst [vmem:[%s2 + $0x60] sm:$0xff] %v116
  %205 = vst [vmem:[%s2 + $0x68] sm:$0xff] %v119
  %206 = vst [vmem:[%s2 + $0x70] sm:$0xff] %v122
  %207 = vst [vmem:[%s2 + $0x78] sm:$0xff] %v125
  %208 = vst [vmem:[%s3] sm:$0xff] %v145
  %209 = vst [vmem:[%s3 + $0x8] sm:$0xff] %v148
  %210 = vst [vmem:[%s3 + $0x10] sm:$0xff] %v151
  %211 = vst [vmem:[%s3 + $0x18] sm:$0xff] %v154
  %212 = vst [vmem:[%s3 + $0x20] sm:$0xff] %v157
  %213 = vst [vmem:[%s3 + $0x28] sm:$0xff] %v160
  %214 = vst [vmem:[%s3 + $0x30] sm:$0xff] %v163
  %215 = vst [vmem:[%s3 + $0x38] sm:$0xff] %v166
  %216 = vst [vmem:[%s3 + $0x40] sm:$0xff] %v169
  %217 = vst [vmem:[%s3 + $0x48] sm:$0xff] %v172
  %218 = vst [vmem:[%s3 + $0x50] sm:$0xff] %v175
  %219 = vst [vmem:[%s3 + $0x58] sm:$0xff] %v178
  %220 = vst [vmem:[%s3 + $0x60] sm:$0xff] %v181
  %221 = vst [vmem:[%s3 + $0x68] sm:$0xff] %v184
  %222 = vst [vmem:[%s3 + $0x70] sm:$0xff] %v187
  %223 = vst [vmem:[%s3 + $0x78] sm:$0xff] %v190
  %v224 = vadd.f32 %v80, %v83
  %v225 = vadd.f32 %v224, %v86
  %v226 = vadd.f32 %v225, %v89
  %v227 = vadd.f32 %v226, %v92
  %v228 = vadd.f32 %v227, %v95
  %v229 = vadd.f32 %v228, %v98
  %v230 = vadd.f32 %v229, %v101
  %v231 = vadd.f32 %v230, %v104
  %v232 = vadd.f32 %v231, %v107
  %v233 = vadd.f32 %v232, %v110
  %v234 = vadd.f32 %v233, %v113
  %v235 = vadd.f32 %v234, %v116
  %v236 = vadd.f32 %v235, %v119
  %v237 = vadd.f32 %v236, %v122
  %v238 = vadd.f32 %v237, %v125
  %v239 = vrot.slane %v238, 4
  %v240 = vadd.f32 %v238, %v239
  %v241 = vrot.slane %v240, 2
  %v242 = vadd.f32 %v240, %v241
  %v243 = vrot.slane %v242, 1
  %v244 = vadd.f32 %v242, %v243
  %v245 = vadd.f32 %v145, %v148
  %v246 = vadd.f32 %v245, %v151
  %v247 = vadd.f32 %v246, %v154
  %v248 = vadd.f32 %v247, %v157
  %v249 = vadd.f32 %v248, %v160
  %v250 = vadd.f32 %v249, %v163
  %v251 = vadd.f32 %v250, %v166
  %v252 = vadd.f32 %v251, %v169
  %v253 = vadd.f32 %v252, %v172
  %v254 = vadd.f32 %v253, %v175
  %v255 = vadd.f32 %v254, %v178
  %v256 = vadd.f32 %v255, %v181
  %v257 = vadd.f32 %v256, %v184
  %v258 = vadd.f32 %v257, %v187
  %v259 = vadd.f32 %v258, %v190
  %v260 = vrot.slane %v259, 4
  %v261 = vadd.f32 %v259, %v260
  %v262 = vrot.slane %v261, 2
  %v263 = vadd.f32 %v261, %v262
  %v264 = vrot.slane %v263, 1
  %v265 = vadd.f32 %v263, %v264
  %v266 = vmul.f32 %v80, %v80
  %v267 = vmul.f32 %v145, %v145
  %v268 = vmul.f32 %v83, %v83
  %v269 = vmul.f32 %v148, %v148
  %v270 = vmul.f32 %v86, %v86
  %v271 = vmul.f32 %v151, %v151
  %v272 = vmul.f32 %v89, %v89
  %v273 = vmul.f32 %v154, %v154
  %v274 = vmul.f32 %v92, %v92
  %v275 = vmul.f32 %v157, %v157
  %v276 = vmul.f32 %v95, %v95
  %v277 = vmul.f32 %v160, %v160
  %v278 = vmul.f32 %v98, %v98
  %v279 = vmul.f32 %v163, %v163
  %v280 = vmul.f32 %v101, %v101
  %v281 = vmul.f32 %v166, %v166
  %v282 = vmul.f32 %v104, %v104
  %v283 = vmul.f32 %v169, %v169
  %v284 = vmul.f32 %v107, %v107
  %v285 = vmul.f32 %v172, %v172
  %v286 = vmul.f32 %v110, %v110
  %v287 = vmul.f32 %v175, %v175
  %v288 = vmul.f32 %v113, %v113
  %v289 = vmul.f32 %v178, %v178
  %v290 = vmul.f32 %v116, %v116
  %v291 = vmul.f32 %v181, %v181
  %v292 = vmul.f32 %v119, %v119
  %v293 = vmul.f32 %v184, %v184
  %v294 = vmul.f32 %v122, %v122
  %v295 = vmul.f32 %v187, %v187
  %v296 = vmul.f32 %v125, %v125
  %v297 = vmul.f32 %v190, %v190
  %v298 = vadd.f32 %v266, %v268
  %v299 = vadd.f32 %v298, %v270
  %v300 = vadd.f32 %v299, %v272
  %v301 = vadd.f32 %v300, %v274
  %v302 = vadd.f32 %v301, %v276
  %v303 = vadd.f32 %v302, %v278
  %v304 = vadd.f32 %v303, %v280
  %v305 = vadd.f32 %v304, %v282
  %v306 = vadd.f32 %v305, %v284
  %v307 = vadd.f32 %v306, %v286
  %v308 = vadd.f32 %v307, %v288
  %v309 = vadd.f32 %v308, %v290
  %v310 = vadd.f32 %v309, %v292
  %v311 = vadd.f32 %v310, %v294
  %v312 = vadd.f32 %v311, %v296
  %v313 = vrot.slane %v312, 4
  %v314 = vadd.f32 %v312, %v313
  %v315 = vrot.slane %v314, 2
  %v316 = vadd.f32 %v314, %v315
  %v317 = vrot.slane %v316, 1
  %v318 = vadd.f32 %v316, %v317
  %v319 = vadd.f32 %v267, %v269
  %v320 = vadd.f32 %v319, %v271
  %v321 = vadd.f32 %v320, %v273
  %v322 = vadd.f32 %v321, %v275
  %v323 = vadd.f32 %v322, %v277
  %v324 = vadd.f32 %v323, %v279
  %v325 = vadd.f32 %v324, %v281
  %v326 = vadd.f32 %v325, %v283
  %v327 = vadd.f32 %v326, %v285
  %v328 = vadd.f32 %v327, %v287
  %v329 = vadd.f32 %v328, %v289
  %v330 = vadd.f32 %v329, %v291
  %v331 = vadd.f32 %v330, %v293
  %v332 = vadd.f32 %v331, %v295
  %v333 = vadd.f32 %v332, %v297
  %v334 = vrot.slane %v333, 4
  %v335 = vadd.f32 %v333, %v334
  %v336 = vrot.slane %v335, 2
  %v337 = vadd.f32 %v335, %v336
  %v338 = vrot.slane %v337, 1
  %v339 = vadd.f32 %v337, %v338
  %vm340 = vcmask 1040384
  %v341 = vsel %vm340, %v244, %v318
  %v342 = vsel %vm340, %v265, %v339
  %v345 = vrot.slane %v342, 6
  %vm346 = vcmask 1041408
  %v347 = vsel %vm346, %v341, %v345
  %349 = vst [vmem:[%s4] sm:$0xf] %v347
  // Predicated region
  $region10: #{conv_block_forward.4} parent=0 // pred_check
    _
  $region11: #{conv_block_forward.4} parent=0 // pred_check_branch
    %351 = sbr.rel (0) target = $region13
  $region12: #{conv_block_forward.4} parent=0 // pred_region
    _
  $region13: #{conv_block_forward.4} parent=0 // pred_fallthru
    _
  // Predicated region
  $region14: #{conv_block_forward.4} parent=0 // pred_check
    _
  $region15: #{conv_block_forward.4} parent=0 // pred_check_branch
    %353 = sbr.rel (0) target = $region17
  $region16: #{conv_block_forward.4} parent=0 // pred_region
    _
  $region17: #{conv_block_forward.4} parent=0 // pred_fallthru
    _
  // Predicated region
  $region18: #{conv_block_forward.4} parent=0 // pred_check
    _
  $region19: #{conv_block_forward.4} parent=0 // pred_check_branch
    %355 = sbr.rel (0) target = $region21
  $region20: #{conv_block_forward.4} parent=0 // pred_region
    _
  $region21: #{conv_block_forward.4} parent=0 // pred_fallthru
    _
  // Predicated region
  $region22: #{conv_block_forward.4} parent=0 // pred_check
    _
  $region23: #{conv_block_forward.4} parent=0 // pred_check_branch
    %357 = sbr.rel (0) target = $region25
  $region24: #{conv_block_forward.4} parent=0 // pred_region
    _
  $region25: #{conv_block_forward.4} parent=0 // pred_fallthru
    _
  // Predicated region
  $region26: #{conv_block_forward.4} parent=0 // pred_check
    _
  $region27: #{conv_block_forward.4} parent=0 // pred_check_branch
    %359 = sbr.rel (0) target = $region29
  $region28: #{conv_block_forward.4} parent=0 // pred_region
    _
  $region29: #{conv_block_forward.4} parent=0 // pred_fallthru
    _
  // Predicated region
  $region30: #{conv_block_forward.4} parent=0 // pred_check
    _
  $region31: #{conv_block_forward.4} parent=0 // pred_check_branch
    %361 = sbr.rel (0) target = $region33
  $region32: #{conv_block_forward.4} parent=0 // pred_region
    _
  $region33: #{conv_block_forward.4} parent=0 // pred_fallthru
    _

// kernel: conv_block_forward.6
$region0: #{conv_block_forward.6}
  #allocation0 [shape = 'u32[]', space=smem, size = 0x4, offset = 0x4, fixed_abs, tag = 'smem constant byte address 0x4 - core index']
  #allocation1 [shape = 'u32[72,128]{1,0:T(1,128)}', space=vmem, size = 0x9000, scoped, tag = 'internal scratch']
  %s0 = inlined_call_operand.vmem [shape: f32[128,128], index: 0, kind: input, shape index: {}]
  %s1 = inlined_call_operand.vmem [shape: f32[2,128], index: 1, kind: input, shape index: {}]
  %s2 = inlined_call_operand.vmem [shape: f32[128,128], index: 2, kind: input, shape index: {}]
  %s3 = inlined_call_operand.vmem [shape: f32[128,128], index: 3, kind: output, shape index: {0}]
  %s4 = inlined_call_operand.vmem [shape: f32[1,2,128], index: 4, kind: output, shape index: {1}]
  %5 = xla_tuple %s3, %s4
  %s6 = sld [smem:[#allocation0]]
  $region30: #{conv_block_forward.6} parent=0
    _
  %s8 = ssub.s32 1, %s6
  %s9 = scalar_select 0, %s8, %s6
  // Predicated region
  $region2: #{conv_block_forward.6} parent=0 // pred_check
    _
  $region3: #{conv_block_forward.6} parent=0 // pred_check_branch
    %11 = sbr.rel (0) target = $region5
  $region4: #{conv_block_forward.6} parent=0 // pred_region
    _
  $region5: #{conv_block_forward.6} parent=0 // pred_fallthru
    _
  // Predicated region
  $region6: #{conv_block_forward.6} parent=0 // pred_check
    _
  $region7: #{conv_block_forward.6} parent=0 // pred_check_branch
    %13 = sbr.rel (0) target = $region9
  $region8: #{conv_block_forward.6} parent=0 // pred_region
    _
  $region9: #{conv_block_forward.6} parent=0 // pred_fallthru
    _
  // Predicated region
  $region10: #{conv_block_forward.6} parent=0 // pred_check
    _
  $region11: #{conv_block_forward.6} parent=0 // pred_check_branch
    %15 = sbr.rel (0) target = $region13
  $region12: #{conv_block_forward.6} parent=0 // pred_region
    _
  $region13: #{conv_block_forward.6} parent=0 // pred_fallthru
    _
  %v16 = vld [vmem:[%s1] sm:$0x1]
  %v17 = vld [vmem:[%s1 + $0x1] sm:$0x1]
  %v18 = vld [vmem:[%s0] sm:$0xff]
  %v19 = vld [vmem:[%s0 + $0x8] sm:$0xff]
  %v20 = vld [vmem:[%s0 + $0x10] sm:$0xff]
  %v21 = vld [vmem:[%s0 + $0x18] sm:$0xff]
  %v22 = vld [vmem:[%s0 + $0x20] sm:$0xff]
  %v23 = vld [vmem:[%s0 + $0x28] sm:$0xff]
  %v24 = vld [vmem:[%s0 + $0x30] sm:$0xff]
  %v25 = vld [vmem:[%s0 + $0x38] sm:$0xff]
  %v26 = vld [vmem:[%s0 + $0x40] sm:$0xff]
  %v27 = vld [vmem:[%s0 + $0x48] sm:$0xff]
  %v28 = vld [vmem:[%s0 + $0x50] sm:$0xff]
  %v29 = vld [vmem:[%s0 + $0x58] sm:$0xff]
  %v30 = vld [vmem:[%s0 + $0x60] sm:$0xff]
  %v31 = vld [vmem:[%s0 + $0x68] sm:$0xff]
  %v32 = vld [vmem:[%s0 + $0x70] sm:$0xff]
  %v33 = vld [vmem:[%s0 + $0x78] sm:$0xff]
  %v34 = vperm.slane %v16, 0
  %v35 = vmul.f32 %v18, %v34
  %v36 = vmul.f32 %v19, %v34
  %v37 = vmul.f32 %v20, %v34
  %v38 = vmul.f32 %v21, %v34
  %v39 = vmul.f32 %v22, %v34
  %v40 = vmul.f32 %v23, %v34
  %v41 = vmul.f32 %v24, %v34
  %v42 = vmul.f32 %v25, %v34
  %v43 = vmul.f32 %v26, %v34
  %v44 = vmul.f32 %v27, %v34
  %v45 = vmul.f32 %v28, %v34
  %v46 = vmul.f32 %v29, %v34
  %v47 = vmul.f32 %v30, %v34
  %v48 = vmul.f32 %v31, %v34
  %v49 = vmul.f32 %v32, %v34
  %v50 = vmul.f32 %v33, %v34
  %v51 = vperm.slane %v17, 0
  %v52 = vadd.f32 %v35, %v51
  %v53 = vadd.f32 %v36, %v51
  %v54 = vadd.f32 %v37, %v51
  %v55 = vadd.f32 %v38, %v51
  %v56 = vadd.f32 %v39, %v51
  %v57 = vadd.f32 %v40, %v51
  %v58 = vadd.f32 %v41, %v51
  %v59 = vadd.f32 %v42, %v51
  %v60 = vadd.f32 %v43, %v51
  %v61 = vadd.f32 %v44, %v51
  %v62 = vadd.f32 %v45, %v51
  %v63 = vadd.f32 %v46, %v51
  %v64 = vadd.f32 %v47, %v51
  %v65 = vadd.f32 %v48, %v51
  %v66 = vadd.f32 %v49, %v51
  %v67 = vadd.f32 %v50, %v51
  %v68 = vmax.f32 %v52, 0.0
  %v69 = vmax.f32 %v53, 0.0
  %v70 = vmax.f32 %v54, 0.0
  %v71 = vmax.f32 %v55, 0.0
  %v72 = vmax.f32 %v56, 0.0
  %v73 = vmax.f32 %v57, 0.0
  %v74 = vmax.f32 %v58, 0.0
  %v75 = vmax.f32 %v59, 0.0
  %v76 = vmax.f32 %v60, 0.0
  %v77 = vmax.f32 %v61, 0.0
  %v78 = vmax.f32 %v62, 0.0
  %v79 = vmax.f32 %v63, 0.0
  %v80 = vmax.f32 %v64, 0.0
  %v81 = vmax.f32 %v65, 0.0
  %v82 = vmax.f32 %v66, 0.0
  %v83 = vmax.f32 %v67, 0.0
  %v84 = vlaneseq
  %v85 = vshrl.u32 %v84, 7
  %v86 = vadd.s32 %v85, 8
  %v87 = vadd.s32 %v85, 16
  %v88 = vadd.s32 %v85, 24
  %v89 = vadd.s32 %v85, 32
  %v90 = vadd.s32 %v85, 40
  %v91 = vadd.s32 %v85, 48
  %v92 = vadd.s32 %v85, 56
  %v93 = vadd.s32 %v85, 64
  %v94 = vadd.s32 %v85, 72
  %v95 = vadd.s32 %v85, 80
  %v96 = vadd.s32 %v85, 88
  %v97 = vadd.s32 %v85, 96
  %v98 = vadd.s32 %v85, 104
  %v99 = vadd.s32 %v85, 112
  %v100 = vadd.s32 %v85, 120
  %s101 = smul.u32 0, 128
  %v102 = vstv %s101
  %v103 = vadd.s32 %v85, %v102
  %v104 = vadd.s32 %v86, %v102
  %v105 = vadd.s32 %v87, %v102
  %v106 = vadd.s32 %v88, %v102
  %v107 = vadd.s32 %v89, %v102
  %v108 = vadd.s32 %v90, %v102
  %v109 = vadd.s32 %v91, %v102
  %v110 = vadd.s32 %v92, %v102
  %v111 = vadd.s32 %v93, %v102
  %v112 = vadd.s32 %v94, %v102
  %v113 = vadd.s32 %v95, %v102
  %v114 = vadd.s32 %v96, %v102
  %v115 = vadd.s32 %v97, %v102
  %v116 = vadd.s32 %v98, %v102
  %v117 = vadd.s32 %v99, %v102
  %v118 = vadd.s32 %v100, %v102
  %vm119 = vcmp.lt.s32.totalorder %v103, 128
  %vm120 = vcmp.lt.s32.totalorder %v104, 128
  %vm121 = vcmp.lt.s32.totalorder %v105, 128
  %vm122 = vcmp.lt.s32.totalorder %v106, 128
  %vm123 = vcmp.lt.s32.totalorder %v107, 128
  %vm124 = vcmp.lt.s32.totalorder %v108, 128
  %vm125 = vcmp.lt.s32.totalorder %v109, 128
  %vm126 = vcmp.lt.s32.totalorder %v110, 128
  %vm127 = vcmp.lt.s32.totalorder %v111, 128
  %vm128 = vcmp.lt.s32.totalorder %v112, 128
  %vm129 = vcmp.lt.s32.totalorder %v113, 128
  %vm130 = vcmp.lt.s32.totalorder %v114, 128
  %vm131 = vcmp.lt.s32.totalorder %v115, 128
  %vm132 = vcmp.lt.s32.totalorder %v116, 128
  %vm133 = vcmp.lt.s32.totalorder %v117, 128
  %vm134 = vcmp.lt.s32.totalorder %v118, 128
  %v135 = vsel %vm119, 1, 0
  %v136 = vsel %vm120, 1, 0
  %v137 = vsel %vm121, 1, 0
  %v138 = vsel %vm122, 1, 0
  %v139 = vsel %vm123, 1, 0
  %v140 = vsel %vm124, 1, 0
  %v141 = vsel %vm125, 1, 0
  %v142 = vsel %vm126, 1, 0
  %v143 = vsel %vm127, 1, 0
  %v144 = vsel %vm128, 1, 0
  %v145 = vsel %vm129, 1, 0
  %v146 = vsel %vm130, 1, 0
  %v147 = vsel %vm131, 1, 0
  %v148 = vsel %vm132, 1, 0
  %v149 = vsel %vm133, 1, 0
  %v150 = vsel %vm134, 1, 0
  %vm151 = vcmp.eq.s32.totalorder %v135, 1
  %vm152 = vcmp.eq.s32.totalorder %v136, 1
  %vm153 = vcmp.eq.s32.totalorder %v137, 1
  %vm154 = vcmp.eq.s32.totalorder %v138, 1
  %vm155 = vcmp.eq.s32.totalorder %v139, 1
  %vm156 = vcmp.eq.s32.totalorder %v140, 1
  %vm157 = vcmp.eq.s32.totalorder %v141, 1
  %vm158 = vcmp.eq.s32.totalorder %v142, 1
  %vm159 = vcmp.eq.s32.totalorder %v143, 1
  %vm160 = vcmp.eq.s32.totalorder %v144, 1
  %vm161 = vcmp.eq.s32.totalorder %v145, 1
  %vm162 = vcmp.eq.s32.totalorder %v146, 1
  %vm163 = vcmp.eq.s32.totalorder %v147, 1
  %vm164 = vcmp.eq.s32.totalorder %v148, 1
  %vm165 = vcmp.eq.s32.totalorder %v149, 1
  %vm166 = vcmp.eq.s32.totalorder %v150, 1
  %v167 = vsel %vm151, %v68, 0.0
  %v168 = vsel %vm152, %v69, 0.0
  %v169 = vsel %vm153, %v70, 0.0
  %v170 = vsel %vm154, %v71, 0.0
  %v171 = vsel %vm155, %v72, 0.0
  %v172 = vsel %vm156, %v73, 0.0
  %v173 = vsel %vm157, %v74, 0.0
  %v174 = vsel %vm158, %v75, 0.0
  %v175 = vsel %vm159, %v76, 0.0
  %v176 = vsel %vm160, %v77, 0.0
  %v177 = vsel %vm161, %v78, 0.0
  %v178 = vsel %vm162, %v79, 0.0
  %v179 = vsel %vm163, %v80, 0.0
  %v180 = vsel %vm164, %v81, 0.0
  %v181 = vsel %vm165, %v82, 0.0
  %v182 = vsel %vm166, %v83, 0.0
  %v183 = vld [vmem:[%s2] sm:$0xff]
  %v184 = vld [vmem:[%s2 + $0x8] sm:$0xff]
  %v185 = vld [vmem:[%s2 + $0x10] sm:$0xff]
  %v186 = vld [vmem:[%s2 + $0x18] sm:$0xff]
  %v187 = vld [vmem:[%s2 + $0x20] sm:$0xff]
  %v188 = vld [vmem:[%s2 + $0x28] sm:$0xff]
  %v189 = vld [vmem:[%s2 + $0x30] sm:$0xff]
  %v190 = vld [vmem:[%s2 + $0x38] sm:$0xff]
  %v191 = vld [vmem:[%s2 + $0x40] sm:$0xff]
  %v192 = vld [vmem:[%s2 + $0x48] sm:$0xff]
  %v193 = vld [vmem:[%s2 + $0x50] sm:$0xff]
  %v194 = vld [vmem:[%s2 + $0x58] sm:$0xff]
  %v195 = vld [vmem:[%s2 + $0x60] sm:$0xff]
  %v196 = vld [vmem:[%s2 + $0x68] sm:$0xff]
  %v197 = vld [vmem:[%s2 + $0x70] sm:$0xff]
  %v198 = vld [vmem:[%s2 + $0x78] sm:$0xff]
  %199 = vmatpush.msra.mxu0 %v198
  %200 = vmatpush.msra.mxu0 %v197
  %201 = vmatpush.msra.mxu0 %v196
  %202 = vmatpush.msra.mxu0 %v195
  %203 = vmatpush.msra.mxu0 %v194
  %204 = vmatpush.msra.mxu0 %v193
  %205 = vmatpush.msra.mxu0 %v192
  %206 = vmatpush.msra.mxu0 %v191
  %207 = vmatpush.msra.mxu0 %v190
  %208 = vmatpush.msra.mxu0 %v189
  %209 = vmatpush.msra.mxu0 %v188
  %210 = vmatpush.msra.mxu0 %v187
  %211 = vmatpush.msra.mxu0 %v186
  %212 = vmatpush.msra.mxu0 %v185
  %213 = vmatpush.msra.mxu0 %v184
  %214 = vmatpush.msra.mxu0 %v183
  %215 = vmatmul.f32.gmra.mxu0 %v167
  %v216 = vpop.f32.mrf.mxu0
  %v217 = vadd.f32 0.0, %v216
  %218 = vmatmul.f32.gmra.mxu0 %v168
  %v219 = vpop.f32.mrf.mxu0
  %v220 = vadd.f32 0.0, %v219
  %221 = vmatmul.f32.gmra.mxu0 %v169
  %v222 = vpop.f32.mrf.mxu0
  %v223 = vadd.f32 0.0, %v222
  %224 = vmatmul.f32.gmra.mxu0 %v170
  %v225 = vpop.f32.mrf.mxu0
  %v226 = vadd.f32 0.0, %v225
  %227 = vmatmul.f32.gmra.mxu0 %v171
  %v228 = vpop.f32.mrf.mxu0
  %v229 = vadd.f32 0.0, %v228
  %230 = vmatmul.f32.gmra.mxu0 %v172
  %v231 = vpop.f32.mrf.mxu0
  %v232 = vadd.f32 0.0, %v231
  %233 = vmatmul.f32.gmra.mxu0 %v173
  %v234 = vpop.f32.mrf.mxu0
  %v235 = vadd.f32 0.0, %v234
  %236 = vmatmul.f32.gmra.mxu0 %v174
  %v237 = vpop.f32.mrf.mxu0
  %v238 = vadd.f32 0.0, %v237
  %239 = vmatmul.f32.gmra.mxu0 %v175
  %v240 = vpop.f32.mrf.mxu0
  %v241 = vadd.f32 0.0, %v240
  %242 = vmatmul.f32.gmra.mxu0 %v176
  %v243 = vpop.f32.mrf.mxu0
  %v244 = vadd.f32 0.0, %v243
  %245 = vmatmul.f32.gmra.mxu0 %v177
  %v246 = vpop.f32.mrf.mxu0
  %v247 = vadd.f32 0.0, %v246
  %248 = vmatmul.f32.gmra.mxu0 %v178
  %v249 = vpop.f32.mrf.mxu0
  %v250 = vadd.f32 0.0, %v249
  %251 = vmatmul.f32.gmra.mxu0 %v179
  %v252 = vpop.f32.mrf.mxu0
  %v253 = vadd.f32 0.0, %v252
  %254 = vmatmul.f32.gmra.mxu0 %v180
  %v255 = vpop.f32.mrf.mxu0
  %v256 = vadd.f32 0.0, %v255
  %257 = vmatmul.f32.gmra.mxu0 %v181
  %v258 = vpop.f32.mrf.mxu0
  %v259 = vadd.f32 0.0, %v258
  %260 = vmatmul.f32.gmra.mxu0 %v182
  %v261 = vpop.f32.mrf.mxu0
  %v262 = vadd.f32 0.0, %v261
  %263 = vdwg.mxu0
  %264 = vst [vmem:[%s3] sm:$0xff] %v217
  %265 = vst [vmem:[%s3 + $0x8] sm:$0xff] %v220
  %266 = vst [vmem:[%s3 + $0x10] sm:$0xff] %v223
  %267 = vst [vmem:[%s3 + $0x18] sm:$0xff] %v226
  %268 = vst [vmem:[%s3 + $0x20] sm:$0xff] %v229
  %269 = vst [vmem:[%s3 + $0x28] sm:$0xff] %v232
  %270 = vst [vmem:[%s3 + $0x30] sm:$0xff] %v235
  %271 = vst [vmem:[%s3 + $0x38] sm:$0xff] %v238
  %272 = vst [vmem:[%s3 + $0x40] sm:$0xff] %v241
  %273 = vst [vmem:[%s3 + $0x48] sm:$0xff] %v244
  %274 = vst [vmem:[%s3 + $0x50] sm:$0xff] %v247
  %275 = vst [vmem:[%s3 + $0x58] sm:$0xff] %v250
  %276 = vst [vmem:[%s3 + $0x60] sm:$0xff] %v253
  %277 = vst [vmem:[%s3 + $0x68] sm:$0xff] %v256
  %278 = vst [vmem:[%s3 + $0x70] sm:$0xff] %v259
  %279 = vst [vmem:[%s3 + $0x78] sm:$0xff] %v262
  %v280 = vadd.f32 %v217, %v220
  %v281 = vadd.f32 %v280, %v223
  %v282 = vadd.f32 %v281, %v226
  %v283 = vadd.f32 %v282, %v229
  %v284 = vadd.f32 %v283, %v232
  %v285 = vadd.f32 %v284, %v235
  %v286 = vadd.f32 %v285, %v238
  %v287 = vadd.f32 %v286, %v241
  %v288 = vadd.f32 %v287, %v244
  %v289 = vadd.f32 %v288, %v247
  %v290 = vadd.f32 %v289, %v250
  %v291 = vadd.f32 %v290, %v253
  %v292 = vadd.f32 %v291, %v256
  %v293 = vadd.f32 %v292, %v259
  %v294 = vadd.f32 %v293, %v262
  %v295 = vrot.slane %v294, 4
  %v296 = vadd.f32 %v294, %v295
  %v297 = vrot.slane %v296, 2
  %v298 = vadd.f32 %v296, %v297
  %v299 = vrot.slane %v298, 1
  %v300 = vadd.f32 %v298, %v299
  %v301 = vmul.f32 %v217, %v217
  %v302 = vmul.f32 %v220, %v220
  %v303 = vmul.f32 %v223, %v223
  %v304 = vmul.f32 %v226, %v226
  %v305 = vmul.f32 %v229, %v229
  %v306 = vmul.f32 %v232, %v232
  %v307 = vmul.f32 %v235, %v235
  %v308 = vmul.f32 %v238, %v238
  %v309 = vmul.f32 %v241, %v241
  %v310 = vmul.f32 %v244, %v244
  %v311 = vmul.f32 %v247, %v247
  %v312 = vmul.f32 %v250, %v250
  %v313 = vmul.f32 %v253, %v253
  %v314 = vmul.f32 %v256, %v256
  %v315 = vmul.f32 %v259, %v259
  %v316 = vmul.f32 %v262, %v262
  %v317 = vadd.f32 %v301, %v302
  %v318 = vadd.f32 %v317, %v303
  %v319 = vadd.f32 %v318, %v304
  %v320 = vadd.f32 %v319, %v305
  %v321 = vadd.f32 %v320, %v306
  %v322 = vadd.f32 %v321, %v307
  %v323 = vadd.f32 %v322, %v308
  %v324 = vadd.f32 %v323, %v309
  %v325 = vadd.f32 %v324, %v310
  %v326 = vadd.f32 %v325, %v311
  %v327 = vadd.f32 %v326, %v312
  %v328 = vadd.f32 %v327, %v313
  %v329 = vadd.f32 %v328, %v314
  %v330 = vadd.f32 %v329, %v315
  %v331 = vadd.f32 %v330, %v316
  %v332 = vrot.slane %v331, 4
  %v333 = vadd.f32 %v331, %v332
  %v334 = vrot.slane %v333, 2
  %v335 = vadd.f32 %v333, %v334
  %v336 = vrot.slane %v335, 1
  %v337 = vadd.f32 %v335, %v336
  %vm338 = vcmask 1040384
  %v339 = vsel %vm338, %v300, %v337
  %340 = vst [vmem:[%s4] sm:$0x3] %v339
  // Predicated region
  $region14: #{conv_block_forward.6} parent=0 // pred_check
    _
  $region15: #{conv_block_forward.6} parent=0 // pred_check_branch
    %342 = sbr.rel (0) target = $region17
  $region16: #{conv_block_forward.6} parent=0 // pred_region
    _
  $region17: #{conv_block_forward.6} parent=0 // pred_fallthru
    _
  // Predicated region
  $region18: #{conv_block_forward.6} parent=0 // pred_check
    _
  $region19: #{conv_block_forward.6} parent=0 // pred_check_branch
    %344 = sbr.rel (0) target = $region21
  $region20: #{conv_block_forward.6} parent=0 // pred_region
    _
  $region21: #{conv_block_forward.6} parent=0 // pred_fallthru
    _
  // Predicated region
  $region22: #{conv_block_forward.6} parent=0 // pred_check
    _
  $region23: #{conv_block_forward.6} parent=0 // pred_check_branch
    %346 = sbr.rel (0) target = $region25
  $region24: #{conv_block_forward.6} parent=0 // pred_region
    _
  $region25: #{conv_block_forward.6} parent=0 // pred_fallthru
    _
  // Predicated region
  $region26: #{conv_block_forward.6} parent=0 // pred_check
    _
  $region27: #{conv_block_forward.6} parent=0 // pred_check_branch
    %348 = sbr.rel (0) target = $region29
  $region28: #{conv_block_forward.6} parent=0 // pred_region
    _
  $region29: #{conv_block_forward.6} parent=0 // pred_fallthru
    _

// kernel: conv_block_forward.5
$region0: #{conv_block_forward.5}
  #allocation0 [shape = 'u32[]', space=smem, size = 0x4, offset = 0x4, fixed_abs, tag = 'smem constant byte address 0x4 - core index']
  #allocation1 [shape = 'u32[72,128]{1,0:T(1,128)}', space=vmem, size = 0x9000, scoped, tag = 'internal scratch']
  #allocation2 [shape = 'f32[10,10,128]{2,1,0:T(8,128)}', space=vmem, size = 0x14000, scoped, tag = 'scratch operand']
  %s0 = inlined_call_operand.vmem [shape: f32[2,8,8,128], index: 0, kind: input, shape index: {}]
  %s1 = inlined_call_operand.vmem [shape: f32[2,128], index: 1, kind: input, shape index: {}]
  %s2 = inlined_call_operand.vmem [shape: f32[9,128,128], index: 2, kind: input, shape index: {}]
  %s3 = inlined_call_operand.vmem [shape: f32[2,8,8,128], index: 3, kind: output, shape index: {0}]
  %s4 = inlined_call_operand.vmem [shape: f32[2,2,128], index: 4, kind: output, shape index: {1}]
  %5 = xla_tuple %s3, %s4
  %s6 = sld [smem:[#allocation0]]
  $region53: #{conv_block_forward.5} parent=0
    _
  %s8 = ssub.s32 1, %s6
  %s9 = scalar_select 0, %s8, %s6
  loop: start=0, step=1, limit=4
  $region2: #{conv_block_forward.5} parent=0 // loop_pre_header
    _
  $region3: #{conv_block_forward.5} parent=0 // loop_header
    %s11 = sphi 0, %s15
    %p12 = scmp.ge.s32.totalorder %s11, 4
    %s21 = sphi 0, %s23
    %s24 = sphi 0, %s21
    %s25 = sphi 0, %s24
    %s41 = sphi 0, %s25
    %s45 = sphi 0, %s45
    %s47 = sphi 0, %s45
    %s48 = sphi 0, %s47
    %s62 = sphi 0, %s48
    %s66 = sphi 0, %s66
    %s68 = sphi 0, %s66
    %s69 = sphi 0, %s68
    %s83 = sphi 0, %s69
    %s89 = sphi 0, %s91
    %s92 = sphi 0, %s89
    %s93 = sphi 0, %s92
    %s109 = sphi 0, %s93
    %s115 = sphi 0, %s117
    %s118 = sphi 0, %s115
    %s119 = sphi 0, %s118
    %s135 = sphi 0, %s119
  $region4: #{conv_block_forward.5} parent=0 // loop_header_branch
    %14 = sbr.rel (%p12) target = $region8
  $region5: #{conv_block_forward.5} parent=0 // loop_body
    %s16 = ssub.s32 %s11, 1
    %s17 = ssub.s32 %s11, 2
    %s18 = sadd.s32 %s11, 1
    %s19 = ssub.s32 %s11, %s18
    %p20 = scmp.eq.s32.totalorder %s19, 0
    %s22 = sadd.s32 %s21, 1
    %s23 = scalar_select %p20, %s21, %s22
    %p26 = pneg %p20
    %p27 = scmp.eq.s32.totalorder %s11, 1
    %p28 = por %p26, %p27
    %p29 = scmp.ne.s32.totalorder %s21, %s24
    %p30 = scmp.eq.s32.totalorder %s11, 0
    %p31 = por %p29, %p30
    %p32 = scmp.ne.s32.totalorder %s21, %s24
    %p33 = scmp.eq.s32.totalorder %s16, 1
    %p34 = por %p32, %p33
    %p35 = scmp.ne.s32.totalorder %s24, %s25
    %p36 = scmp.eq.s32.totalorder %s16, 0
    %p37 = por %p35, %p36
    %p38 = scmp.ne.s32.totalorder %s24, %s25
    %p39 = scmp.eq.s32.totalorder %s17, 1
    %p40 = por %p38, %p39
    %p42 = scmp.ne.s32.totalorder %s25, %s41
    %p43 = scmp.eq.s32.totalorder %s17, 0
    %p44 = por %p42, %p43
    %s46 = sadd.s32 %s45, 1
    %p49 = scmp.eq.s32.totalorder %s11, 1
    %p50 = scmp.ne.s32.totalorder %s45, %s47
    %p51 = scmp.eq.s32.totalorder %s11, 0
    %p52 = por %p50, %p51
    %p53 = scmp.ne.s32.totalorder %s45, %s47
    %p54 = scmp.eq.s32.totalorder %s16, 1
    %p55 = por %p53, %p54
    %p56 = scmp.ne.s32.totalorder %s47, %s48
    %p57 = scmp.eq.s32.totalorder %s16, 0
    %p58 = por %p56, %p57
    %p59 = scmp.ne.s32.totalorder %s47, %s48
    %p60 = scmp.eq.s32.totalorder %s17, 1
    %p61 = por %p59, %p60
    %p63 = scmp.ne.s32.totalorder %s48, %s62
    %p64 = scmp.eq.s32.totalorder %s17, 0
    %p65 = por %p63, %p64
    %s67 = sadd.s32 %s66, 1
    %p70 = scmp.eq.s32.totalorder %s11, 1
    %p71 = scmp.ne.s32.totalorder %s66, %s68
    %p72 = scmp.eq.s32.totalorder %s11, 0
    %p73 = por %p71, %p72
    %p74 = scmp.ne.s32.totalorder %s66, %s68
    %p75 = scmp.eq.s32.totalorder %s16, 1
    %p76 = por %p74, %p75
    %p77 = scmp.ne.s32.totalorder %s68, %s69
    %p78 = scmp.eq.s32.totalorder %s16, 0
    %p79 = por %p77, %p78
    %p80 = scmp.ne.s32.totalorder %s68, %s69
    %p81 = scmp.eq.s32.totalorder %s17, 1
    %p82 = por %p80, %p81
    %p84 = scmp.ne.s32.totalorder %s69, %s83
    %p85 = scmp.eq.s32.totalorder %s17, 0
    %p86 = por %p84, %p85
    %s87 = ssub.s32 %s11, %s18
    %p88 = scmp.eq.s32.totalorder %s87, 0
    %s90 = sadd.s32 %s89, 1
    %s91 = scalar_select %p88, %s89, %s90
    %p94 = pneg %p88
    %p95 = scmp.eq.s32.totalorder %s11, 1
    %p96 = por %p94, %p95
    %p97 = scmp.ne.s32.totalorder %s89, %s92
    %p98 = scmp.eq.s32.totalorder %s11, 0
    %p99 = por %p97, %p98
    %p100 = scmp.ne.s32.totalorder %s89, %s92
    %p101 = scmp.eq.s32.totalorder %s16, 1
    %p102 = por %p100, %p101
    %p103 = scmp.ne.s32.totalorder %s92, %s93
    %p104 = scmp.eq.s32.totalorder %s16, 0
    %p105 = por %p103, %p104
    %p106 = scmp.ne.s32.totalorder %s92, %s93
    %p107 = scmp.eq.s32.totalorder %s17, 1
    %p108 = por %p106, %p107
    %p110 = scmp.ne.s32.totalorder %s93, %s109
    %p111 = scmp.eq.s32.totalorder %s17, 0
    %p112 = por %p110, %p111
    %s113 = ssub.s32 %s11, %s18
    %p114 = scmp.eq.s32.totalorder %s113, 0
    %s116 = sadd.s32 %s115, 1
    %s117 = scalar_select %p114, %s115, %s116
    %p120 = pneg %p114
    %p121 = scmp.eq.s32.totalorder %s11, 1
    %p122 = por %p120, %p121
    %p123 = scmp.ne.s32.totalorder %s115, %s118
    %p124 = scmp.eq.s32.totalorder %s11, 0
    %p125 = por %p123, %p124
    %p126 = scmp.ne.s32.totalorder %s115, %s118
    %p127 = scmp.eq.s32.totalorder %s16, 1
    %p128 = por %p126, %p127
    %p129 = scmp.ne.s32.totalorder %s118, %s119
    %p130 = scmp.eq.s32.totalorder %s16, 0
    %p131 = por %p129, %p130
    %p132 = scmp.ne.s32.totalorder %s118, %s119
    %p133 = scmp.eq.s32.totalorder %s17, 1
    %p134 = por %p132, %p133
    %p136 = scmp.ne.s32.totalorder %s119, %s135
    %p137 = scmp.eq.s32.totalorder %s17, 0
    %p138 = por %p136, %p137
    %p139 = scmp.le.s32.totalorder 1, %s11
    %p140 = scmp.lt.s32.totalorder %s11, 3
    %p141 = pnand %p139, %p140
    %p142 = pneg %p141
    // Predicated region
    $region9: #{conv_block_forward.5} parent=5 // pred_check
      _
    $region10: #{conv_block_forward.5} parent=5 // pred_check_branch
      %144 = sbr.rel (%p141) target = $region12
    $region11: #{conv_block_forward.5} parent=5 // pred_region
      %s145 = ssub.s32 %s11, 1
      // Predicated region
      $region13: #{conv_block_forward.5} parent=11 // pred_check
        %p146 = pneg %p58
      $region14: #{conv_block_forward.5} parent=11 // pred_check_branch
        %148 = sbr.rel (%p146) target = $region16
      $region15: #{conv_block_forward.5} parent=11 // pred_region
        _
      $region16: #{conv_block_forward.5} parent=11 // pred_fallthru
        _
      // Predicated region
      $region17: #{conv_block_forward.5} parent=11 // pred_check
        %p149 = pneg %p79
      $region18: #{conv_block_forward.5} parent=11 // pred_check_branch
        %151 = sbr.rel (%p149) target = $region20
      $region19: #{conv_block_forward.5} parent=11 // pred_region
        _
      $region20: #{conv_block_forward.5} parent=11 // pred_fallthru
        _
    $region12: #{conv_block_forward.5} parent=5 // pred_fallthru
      _
    %p152 = scmp.lt.s32.totalorder %s11, 2
    // Predicated region
    $region21: #{conv_block_forward.5} parent=5 // pred_check
      %p153 = pneg %p152
    $region22: #{conv_block_forward.5} parent=5 // pred_check_branch
      %155 = sbr.rel (%p153) target = $region24
    $region23: #{conv_block_forward.5} parent=5 // pred_region
      // Predicated region
      $region25: #{conv_block_forward.5} parent=23 // pred_check
        %p156 = pneg %p31
      $region26: #{conv_block_forward.5} parent=23 // pred_check_branch
        %158 = sbr.rel (%p156) target = $region28
      $region27: #{conv_block_forward.5} parent=23 // pred_region
        %p159 = scmp.lt.s32.totalorder %s11, 1
        %s160 = scalar_select %p159, %s11, 1
        %s161 = smul.addr %s160, 8
        %s162 = smul.addr %s161, 8
        %s163 = scalar_lea.vmem %s0, %s162
      $region28: #{conv_block_forward.5} parent=23 // pred_fallthru
        _
    $region24: #{conv_block_forward.5} parent=5 // pred_fallthru
      _
    %p164 = scmp.le.s32.totalorder 1, %s11
    %p165 = scmp.lt.s32.totalorder %s11, 3
    %p166 = pnand %p164, %p165
    %p167 = pneg %p166
    // Predicated region
    $region29: #{conv_block_forward.5} parent=5 // pred_check
      _
    $region30: #{conv_block_forward.5} parent=5 // pred_check_branch
      %169 = sbr.rel (%p166) target = $region32
    $region31: #{conv_block_forward.5} parent=5 // pred_region
      %s170 = ssub.s32 %s11, 1
      %p171 = scmp.lt.s32.totalorder %s16, 1
      %s172 = scalar_select %p171, %s16, 1
      %s173 = smul.addr %s172, 8
      %s174 = smul.addr %s173, 8
      %s175 = scalar_lea.vmem %s0, %s174
      %p176 = pneg %p37
      %p177 = pneg %p34
      %p178 = pneg %p58
      %p179 = pneg %p55
      %p180 = pneg %p79
      %p181 = pneg %p76
      %p182 = pneg %p105
      %p183 = pneg %p102
      %p184 = scmp.lt.s32.totalorder %s16, 1
      %s185 = scalar_select %p184, %s16, 1
      %s186 = smul.addr %s185, 8
      %s187 = smul.addr %s186, 8
      %s188 = scalar_lea.vmem %s3, %s187
      %p189 = pneg %p131
      %p190 = pneg %p128
      %p191 = scmp.lt.s32.totalorder %s16, 1
      %s192 = scalar_select %p191, %s16, 1
      %s193 = smul.addr %s192, 2
      %s194 = scalar_lea.vmem %s4, %s193
      %p195 = scmp.lt.s32.totalorder %s16, 1
      %s196 = scalar_select %p195, %s16, 1
      %s197 = smul.addr %s196, 8
      %s198 = smul.addr %s197, 8
      %s199 = scalar_lea.vmem %s0, %s198
      %p200 = scmp.lt.s32.totalorder %s16, 1
      %s201 = scalar_select %p200, %s16, 1
      %s202 = smul.addr %s201, 8
      %s203 = smul.addr %s202, 8
      %s204 = scalar_lea.vmem %s3, %s203
      %p205 = scmp.lt.s32.totalorder %s16, 1
      %s206 = scalar_select %p205, %s16, 1
      %s207 = smul.addr %s206, 2
      %s208 = scalar_lea.vmem %s4, %s207
      %v209 = vld [vmem:[%s1] sm:$0x1]
      %v210 = vld [vmem:[%s1 + $0x1] sm:$0x1]
      %v211 = vld [vmem:[%s199] sm:$0xff]
      %v212 = vld [vmem:[%s199 + $0x8] sm:$0xff]
      %v213 = vld [vmem:[%s199 + $0x10] sm:$0xff]
      %v214 = vld [vmem:[%s199 + $0x18] sm:$0xff]
      %v215 = vld [vmem:[%s199 + $0x20] sm:$0xff]
      %v216 = vld [vmem:[%s199 + $0x28] sm:$0xff]
      %v217 = vld [vmem:[%s199 + $0x30] sm:$0xff]
      %v218 = vld [vmem:[%s199 + $0x38] sm:$0xff]
      %v219 = vperm.slane %v209, 0
      %v220 = vmul.f32 %v211, %v219
      %v221 = vmul.f32 %v212, %v219
      %v222 = vmul.f32 %v213, %v219
      %v223 = vmul.f32 %v214, %v219
      %v224 = vmul.f32 %v215, %v219
      %v225 = vmul.f32 %v216, %v219
      %v226 = vmul.f32 %v217, %v219
      %v227 = vmul.f32 %v218, %v219
      %v228 = vperm.slane %v210, 0
      %v229 = vadd.f32 %v220, %v228
      %v230 = vadd.f32 %v221, %v228
      %v231 = vadd.f32 %v222, %v228
      %v232 = vadd.f32 %v223, %v228
      %v233 = vadd.f32 %v224, %v228
      %v234 = vadd.f32 %v225, %v228
      %v235 = vadd.f32 %v226, %v228
      %v236 = vadd.f32 %v227, %v228
      %v237 = vmax.f32 %v229, 0.0
      %v238 = vmax.f32 %v230, 0.0
      %v239 = vmax.f32 %v231, 0.0
      %v240 = vmax.f32 %v232, 0.0
      %v241 = vmax.f32 %v233, 0.0
      %v242 = vmax.f32 %v234, 0.0
      %v243 = vmax.f32 %v235, 0.0
      %v244 = vmax.f32 %v236, 0.0
      %245 = vst [vmem:[#allocation2] sm:$0xff] 0.0
      %246 = vst [vmem:[#allocation2 + $0x8] sm:$0x3] 0.0
      %247 = vst [vmem:[#allocation2 + $0x10] sm:$0xff] 0.0
      %248 = vst [vmem:[#allocation2 + $0x18] sm:$0x3] 0.0
      %249 = vst [vmem:[#allocation2 + $0x20] sm:$0xff] 0.0
      %250 = vst [vmem:[#allocation2 + $0x28] sm:$0x3] 0.0
      %251 = vst [vmem:[#allocation2 + $0x30] sm:$0xff] 0.0
      %252 = vst [vmem:[#allocation2 + $0x38] sm:$0x3] 0.0
      %253 = vst [vmem:[#allocation2 + $0x40] sm:$0xff] 0.0
      %254 = vst [vmem:[#allocation2 + $0x48] sm:$0x3] 0.0
      %255 = vst [vmem:[#allocation2 + $0x50] sm:$0xff] 0.0
      %256 = vst [vmem:[#allocation2 + $0x58] sm:$0x3] 0.0
      %257 = vst [vmem:[#allocation2 + $0x60] sm:$0xff] 0.0
      %258 = vst [vmem:[#allocation2 + $0x68] sm:$0x3] 0.0
      %259 = vst [vmem:[#allocation2 + $0x70] sm:$0xff] 0.0
      %260 = vst [vmem:[#allocation2 + $0x78] sm:$0x3] 0.0
      %261 = vst [vmem:[#allocation2 + $0x80] sm:$0xff] 0.0
      %262 = vst [vmem:[#allocation2 + $0x88] sm:$0x3] 0.0
      %263 = vst [vmem:[#allocation2 + $0x90] sm:$0xff] 0.0
      %264 = vst [vmem:[#allocation2 + $0x98] sm:$0x3] 0.0
      %s265 = scalar_lea.vmem [#allocation2], 16
      %266 = vst [vmem:[%s265 + $0x1] sm:$0xff] %v237
      %267 = vst [vmem:[%s265 + $0x11] sm:$0xff] %v238
      %268 = vst [vmem:[%s265 + $0x21] sm:$0xff] %v239
      %269 = vst [vmem:[%s265 + $0x31] sm:$0xff] %v240
      %270 = vst [vmem:[%s265 + $0x41] sm:$0xff] %v241
      %271 = vst [vmem:[%s265 + $0x51] sm:$0xff] %v242
      %272 = vst [vmem:[%s265 + $0x61] sm:$0xff] %v243
      %273 = vst [vmem:[%s265 + $0x71] sm:$0xff] %v244
      %v274 = vld [vmem:[#allocation2] sm:$0xff]
      %v275 = vld [vmem:[#allocation2 + $0x10] sm:$0xff]
      %v276 = vld [vmem:[#allocation2 + $0x20] sm:$0xff]
      %v277 = vld [vmem:[#allocation2 + $0x30] sm:$0xff]
      %v278 = vld [vmem:[#allocation2 + $0x40] sm:$0xff]
      %v279 = vld [vmem:[#allocation2 + $0x50] sm:$0xff]
      %v280 = vld [vmem:[#allocation2 + $0x60] sm:$0xff]
      %v281 = vld [vmem:[#allocation2 + $0x70] sm:$0xff]
      %v282 = vld [vmem:[%s2] sm:$0xff]
      %v283 = vld [vmem:[%s2 + $0x8] sm:$0xff]
      %v284 = vld [vmem:[%s2 + $0x10] sm:$0xff]
      %v285 = vld [vmem:[%s2 + $0x18] sm:$0xff]
      %v286 = vld [vmem:[%s2 + $0x20] sm:$0xff]
      %v287 = vld [vmem:[%s2 + $0x28] sm:$0xff]
      %v288 = vld [vmem:[%s2 + $0x30] sm:$0xff]
      %v289 = vld [vmem:[%s2 + $0x38] sm:$0xff]
      %v290 = vld [vmem:[%s2 + $0x40] sm:$0xff]
      %v291 = vld [vmem:[%s2 + $0x48] sm:$0xff]
      %v292 = vld [vmem:[%s2 + $0x50] sm:$0xff]
      %v293 = vld [vmem:[%s2 + $0x58] sm:$0xff]
      %v294 = vld [vmem:[%s2 + $0x60] sm:$0xff]
      %v295 = vld [vmem:[%s2 + $0x68] sm:$0xff]
      %v296 = vld [vmem:[%s2 + $0x70] sm:$0xff]
      %v297 = vld [vmem:[%s2 + $0x78] sm:$0xff]
      %v298 = vld [vmem:[#allocation2 + $0x1] sm:$0xff]
      %v299 = vld [vmem:[#allocation2 + $0x11] sm:$0xff]
      %v300 = vld [vmem:[#allocation2 + $0x21] sm:$0xff]
      %v301 = vld [vmem:[#allocation2 + $0x31] sm:$0xff]
      %v302 = vld [vmem:[#allocation2 + $0x41] sm:$0xff]
      %v303 = vld [vmem:[#allocation2 + $0x51] sm:$0xff]
      %v304 = vld [vmem:[#allocation2 + $0x61] sm:$0xff]
      %v305 = vld [vmem:[#allocation2 + $0x71] sm:$0xff]
      %s306 = scalar_lea.vmem %s2, 128
      %v307 = vld [vmem:[%s306] sm:$0xff]
      %v308 = vld [vmem:[%s306 + $0x8] sm:$0xff]
      %v309 = vld [vmem:[%s306 + $0x10] sm:$0xff]
      %v310 = vld [vmem:[%s306 + $0x18] sm:$0xff]
      %v311 = vld [vmem:[%s306 + $0x20] sm:$0xff]
      %v312 = vld [vmem:[%s306 + $0x28] sm:$0xff]
      %v313 = vld [vmem:[%s306 + $0x30] sm:$0xff]
      %v314 = vld [vmem:[%s306 + $0x38] sm:$0xff]
      %v315 = vld [vmem:[%s306 + $0x40] sm:$0xff]
      %v316 = vld [vmem:[%s306 + $0x48] sm:$0xff]
      %v317 = vld [vmem:[%s306 + $0x50] sm:$0xff]
      %v318 = vld [vmem:[%s306 + $0x58] sm:$0xff]
      %v319 = vld [vmem:[%s306 + $0x60] sm:$0xff]
      %v320 = vld [vmem:[%s306 + $0x68] sm:$0xff]
      %v321 = vld [vmem:[%s306 + $0x70] sm:$0xff]
      %v322 = vld [vmem:[%s306 + $0x78] sm:$0xff]
      %323 = vmatpush.msra.mxu0 %v322
      %324 = vmatpush.msra.mxu0 %v321
      %325 = vmatpush.msra.mxu0 %v320
      %326 = vmatpush.msra.mxu0 %v319
      %327 = vmatpush.msra.mxu0 %v318
      %328 = vmatpush.msra.mxu0 %v317
      %329 = vmatpush.msra.mxu0 %v316
      %330 = vmatpush.msra.mxu0 %v315
      %331 = vmatpush.msra.mxu0 %v314
      %332 = vmatpush.msra.mxu0 %v313
      %333 = vmatpush.msra.mxu0 %v312
      %334 = vmatpush.msra.mxu0 %v311
      %335 = vmatpush.msra.mxu0 %v310
      %336 = vmatpush.msra.mxu0 %v309
      %337 = vmatpush.msra.mxu0 %v308
      %338 = vmatpush.msra.mxu0 %v307
      %339 = vmatmul.f32.gmra.mxu0 %v298
      %v340 = vpop.f32.mrf.mxu0
      %v341 = vadd.f32 0.0, %v340
      %342 = vmatmul.f32.gmra.mxu0 %v299
      %v343 = vpop.f32.mrf.mxu0
      %v344 = vadd.f32 0.0, %v343
      %345 = vmatmul.f32.gmra.mxu0 %v300
      %v346 = vpop.f32.mrf.mxu0
      %v347 = vadd.f32 0.0, %v346
      %348 = vmatmul.f32.gmra.mxu0 %v301
      %v349 = vpop.f32.mrf.mxu0
      %v350 = vadd.f32 0.0, %v349
      %351 = vmatmul.f32.gmra.mxu0 %v302
      %v352 = vpop.f32.mrf.mxu0
      %v353 = vadd.f32 0.0, %v352
      %354 = vmatmul.f32.gmra.mxu0 %v303
      %v355 = vpop.f32.mrf.mxu0
      %v356 = vadd.f32 0.0, %v355
      %357 = vmatmul.f32.gmra.mxu0 %v304
      %v358 = vpop.f32.mrf.mxu0
      %v359 = vadd.f32 0.0, %v358
      %360 = vmatmul.f32.gmra.mxu0 %v305
      %v361 = vpop.f32.mrf.mxu0
      %v362 = vadd.f32 0.0, %v361
      %363 = vdwg.mxu0
      %364 = vmatpush.msra.mxu0 %v297
      %365 = vmatpush.msra.mxu0 %v296
      %366 = vmatpush.msra.mxu0 %v295
      %367 = vmatpush.msra.mxu0 %v294
      %368 = vmatpush.msra.mxu0 %v293
      %369 = vmatpush.msra.mxu0 %v292
      %370 = vmatpush.msra.mxu0 %v291
      %371 = vmatpush.msra.mxu0 %v290
      %372 = vmatpush.msra.mxu0 %v289
      %373 = vmatpush.msra.mxu0 %v288
      %374 = vmatpush.msra.mxu0 %v287
      %375 = vmatpush.msra.mxu0 %v286
      %376 = vmatpush.msra.mxu0 %v285
      %377 = vmatpush.msra.mxu0 %v284
      %378 = vmatpush.msra.mxu0 %v283
      %379 = vmatpush.msra.mxu0 %v282
      %380 = vmatmul.f32.gmra.mxu0 %v274
      %v381 = vpop.f32.mrf.mxu0
      %v382 = vadd.f32 %v341, %v381
      %383 = vmatmul.f32.gmra.mxu0 %v275
      %v384 = vpop.f32.mrf.mxu0
      %v385 = vadd.f32 %v344, %v384
      %386 = vmatmul.f32.gmra.mxu0 %v276
      %v387 = vpop.f32.mrf.mxu0
      %v388 = vadd.f32 %v347, %v387
      %389 = vmatmul.f32.gmra.mxu0 %v277
      %v390 = vpop.f32.mrf.mxu0
      %v391 = vadd.f32 %v350, %v390
      %392 = vmatmul.f32.gmra.mxu0 %v278
      %v393 = vpop.f32.mrf.mxu0
      %v394 = vadd.f32 %v353, %v393
      %395 = vmatmul.f32.gmra.mxu0 %v279
      %v396 = vpop.f32.mrf.mxu0
      %v397 = vadd.f32 %v356, %v396
      %398 = vmatmul.f32.gmra.mxu0 %v280
      %v399 = vpop.f32.mrf.mxu0
      %v400 = vadd.f32 %v359, %v399
      %401 = vmatmul.f32.gmra.mxu0 %v281
      %v402 = vpop.f32.mrf.mxu0
      %v403 = vadd.f32 %v362, %v402
      %404 = vdwg.mxu0
      %v405 = vld [vmem:[#allocation2 + $0x2] sm:$0xff]
      %v406 = vld [vmem:[#allocation2 + $0x12] sm:$0xff]
      %v407 = vld [vmem:[#allocation2 + $0x22] sm:$0xff]
      %v408 = vld [vmem:[#allocation2 + $0x32] sm:$0xff]
      %v409 = vld [vmem:[#allocation2 + $0x42] sm:$0xff]
      %v410 = vld [vmem:[#allocation2 + $0x52] sm:$0xff]
      %v411 = vld [vmem:[#allocation2 + $0x62] sm:$0xff]
      %v412 = vld [vmem:[#allocation2 + $0x72] sm:$0xff]
      %s413 = scalar_lea.vmem %s2, 256
      %v414 = vld [vmem:[%s413] sm:$0xff]
      %v415 = vld [vmem:[%s413 + $0x8] sm:$0xff]
      %v416 = vld [vmem:[%s413 + $0x10] sm:$0xff]
      %v417 = vld [vmem:[%s413 + $0x18] sm:$0xff]
      %v418 = vld [vmem:[%s413 + $0x20] sm:$0xff]
      %v419 = vld [vmem:[%s413 + $0x28] sm:$0xff]
      %v420 = vld [vmem:[%s413 + $0x30] sm:$0xff]
      %v421 = vld [vmem:[%s413 + $0x38] sm:$0xff]
      %v422 = vld [vmem:[%s413 + $0x40] sm:$0xff]
      %v423 = vld [vmem:[%s413 + $0x48] sm:$0xff]
      %v424 = vld [vmem:[%s413 + $0x50] sm:$0xff]
      %v425 = vld [vmem:[%s413 + $0x58] sm:$0xff]
      %v426 = vld [vmem:[%s413 + $0x60] sm:$0xff]
      %v427 = vld [vmem:[%s413 + $0x68] sm:$0xff]
      %v428 = vld [vmem:[%s413 + $0x70] sm:$0xff]
      %v429 = vld [vmem:[%s413 + $0x78] sm:$0xff]
      %430 = vmatpush.msra.mxu0 %v429
      %431 = vmatpush.msra.mxu0 %v428
      %432 = vmatpush.msra.mxu0 %v427
      %433 = vmatpush.msra.mxu0 %v426
      %434 = vmatpush.msra.mxu0 %v425
      %435 = vmatpush.msra.mxu0 %v424
      %436 = vmatpush.msra.mxu0 %v423
      %437 = vmatpush.msra.mxu0 %v422
      %438 = vmatpush.msra.mxu0 %v421
      %439 = vmatpush.msra.mxu0 %v420
      %440 = vmatpush.msra.mxu0 %v419
      %441 = vmatpush.msra.mxu0 %v418
      %442 = vmatpush.msra.mxu0 %v417
      %443 = vmatpush.msra.mxu0 %v416
      %444 = vmatpush.msra.mxu0 %v415
      %445 = vmatpush.msra.mxu0 %v414
      %446 = vmatmul.f32.gmra.mxu0 %v405
      %v447 = vpop.f32.mrf.mxu0
      %v448 = vadd.f32 0.0, %v447
      %449 = vmatmul.f32.gmra.mxu0 %v406
      %v450 = vpop.f32.mrf.mxu0
      %v451 = vadd.f32 0.0, %v450
      %452 = vmatmul.f32.gmra.mxu0 %v407
      %v453 = vpop.f32.mrf.mxu0
      %v454 = vadd.f32 0.0, %v453
      %455 = vmatmul.f32.gmra.mxu0 %v408
      %v456 = vpop.f32.mrf.mxu0
      %v457 = vadd.f32 0.0, %v456
      %458 = vmatmul.f32.gmra.mxu0 %v409
      %v459 = vpop.f32.mrf.mxu0
      %v460 = vadd.f32 0.0, %v459
      %461 = vmatmul.f32.gmra.mxu0 %v410
      %v462 = vpop.f32.mrf.mxu0
      %v463 = vadd.f32 0.0, %v462
      %464 = vmatmul.f32.gmra.mxu0 %v411
      %v465 = vpop.f32.mrf.mxu0
      %v466 = vadd.f32 0.0, %v465
      %467 = vmatmul.f32.gmra.mxu0 %v412
      %v468 = vpop.f32.mrf.mxu0
      %v469 = vadd.f32 0.0, %v468
      %470 = vdwg.mxu0
      %v471 = vadd.f32 %v382, %v448
      %v472 = vadd.f32 %v385, %v451
      %v473 = vadd.f32 %v388, %v454
      %v474 = vadd.f32 %v391, %v457
      %v475 = vadd.f32 %v394, %v460
      %v476 = vadd.f32 %v397, %v463
      %v477 = vadd.f32 %v400, %v466
      %v478 = vadd.f32 %v403, %v469
      %v479 = vld [vmem:[%s265] sm:$0xff]
      %v480 = vld [vmem:[%s265 + $0x10] sm:$0xff]
      %v481 = vld [vmem:[%s265 + $0x20] sm:$0xff]
      %v482 = vld [vmem:[%s265 + $0x30] sm:$0xff]
      %v483 = vld [vmem:[%s265 + $0x40] sm:$0xff]
      %v484 = vld [vmem:[%s265 + $0x50] sm:$0xff]
      %v485 = vld [vmem:[%s265 + $0x60] sm:$0xff]
      %v486 = vld [vmem:[%s265 + $0x70] sm:$0xff]
      %s487 = scalar_lea.vmem %s2, 384
      %v488 = vld [vmem:[%s487] sm:$0xff]
      %v489 = vld [vmem:[%s487 + $0x8] sm:$0xff]
      %v490 = vld [vmem:[%s487 + $0x10] sm:$0xff]
      %v491 = vld [vmem:[%s487 + $0x18] sm:$0xff]
      %v492 = vld [vmem:[%s487 + $0x20] sm:$0xff]
      %v493 = vld [vmem:[%s487 + $0x28] sm:$0xff]
      %v494 = vld [vmem:[%s487 + $0x30] sm:$0xff]
      %v495 = vld [vmem:[%s487 + $0x38] sm:$0xff]
      %v496 = vld [vmem:[%s487 + $0x40] sm:$0xff]
      %v497 = vld [vmem:[%s487 + $0x48] sm:$0xff]
      %v498 = vld [vmem:[%s487 + $0x50] sm:$0xff]
      %v499 = vld [vmem:[%s487 + $0x58] sm:$0xff]
      %v500 = vld [vmem:[%s487 + $0x60] sm:$0xff]
      %v501 = vld [vmem:[%s487 + $0x68] sm:$0xff]
      %v502 = vld [vmem:[%s487 + $0x70] sm:$0xff]
      %v503 = vld [vmem:[%s487 + $0x78] sm:$0xff]
      %504 = vmatpush.msra.mxu0 %v503
      %505 = vmatpush.msra.mxu0 %v502
      %506 = vmatpush.msra.mxu0 %v501
      %507 = vmatpush.msra.mxu0 %v500
      %508 = vmatpush.msra.mxu0 %v499
      %509 = vmatpush.msra.mxu0 %v498
      %510 = vmatpush.msra.mxu0 %v497
      %511 = vmatpush.msra.mxu0 %v496
      %512 = vmatpush.msra.mxu0 %v495
      %513 = vmatpush.msra.mxu0 %v494
      %514 = vmatpush.msra.mxu0 %v493
      %515 = vmatpush.msra.mxu0 %v492
      %516 = vmatpush.msra.mxu0 %v491
      %517 = vmatpush.msra.mxu0 %v490
      %518 = vmatpush.msra.mxu0 %v489
      %519 = vmatpush.msra.mxu0 %v488
      %520 = vmatmul.f32.gmra.mxu0 %v479
      %v521 = vpop.f32.mrf.mxu0
      %v522 = vadd.f32 0.0, %v521
      %523 = vmatmul.f32.gmra.mxu0 %v480
      %v524 = vpop.f32.mrf.mxu0
      %v525 = vadd.f32 0.0, %v524
      %526 = vmatmul.f32.gmra.mxu0 %v481
      %v527 = vpop.f32.mrf.mxu0
      %v528 = vadd.f32 0.0, %v527
      %529 = vmatmul.f32.gmra.mxu0 %v482
      %v530 = vpop.f32.mrf.mxu0
      %v531 = vadd.f32 0.0, %v530
      %532 = vmatmul.f32.gmra.mxu0 %v483
      %v533 = vpop.f32.mrf.mxu0
      %v534 = vadd.f32 0.0, %v533
      %535 = vmatmul.f32.gmra.mxu0 %v484
      %v536 = vpop.f32.mrf.mxu0
      %v537 = vadd.f32 0.0, %v536
      %538 = vmatmul.f32.gmra.mxu0 %v485
      %v539 = vpop.f32.mrf.mxu0
      %v540 = vadd.f32 0.0, %v539
      %541 = vmatmul.f32.gmra.mxu0 %v486
      %v542 = vpop.f32.mrf.mxu0
      %v543 = vadd.f32 0.0, %v542
      %544 = vdwg.mxu0
      %v545 = vadd.f32 %v471, %v522
      %v546 = vadd.f32 %v472, %v525
      %v547 = vadd.f32 %v473, %v528
      %v548 = vadd.f32 %v474, %v531
      %v549 = vadd.f32 %v475, %v534
      %v550 = vadd.f32 %v476, %v537
      %v551 = vadd.f32 %v477, %v540
      %v552 = vadd.f32 %v478, %v543
      %v553 = vld [vmem:[%s265 + $0x1] sm:$0xff]
      %v554 = vld [vmem:[%s265 + $0x11] sm:$0xff]
      %v555 = vld [vmem:[%s265 + $0x21] sm:$0xff]
      %v556 = vld [vmem:[%s265 + $0x31] sm:$0xff]
      %v557 = vld [vmem:[%s265 + $0x41] sm:$0xff]
      %v558 = vld [vmem:[%s265 + $0x51] sm:$0xff]
      %v559 = vld [vmem:[%s265 + $0x61] sm:$0xff]
      %v560 = vld [vmem:[%s265 + $0x71] sm:$0xff]
      %s561 = scalar_lea.vmem %s2, 512
      %v562 = vld [vmem:[%s561] sm:$0xff]
      %v563 = vld [vmem:[%s561 + $0x8] sm:$0xff]
      %v564 = vld [vmem:[%s561 + $0x10] sm:$0xff]
      %v565 = vld [vmem:[%s561 + $0x18] sm:$0xff]
      %v566 = vld [vmem:[%s561 + $0x20] sm:$0xff]
      %v567 = vld [vmem:[%s561 + $0x28] sm:$0xff]
      %v568 = vld [vmem:[%s561 + $0x30] sm:$0xff]
      %v569 = vld [vmem:[%s561 + $0x38] sm:$0xff]
      %v570 = vld [vmem:[%s561 + $0x40] sm:$0xff]
      %v571 = vld [vmem:[%s561 + $0x48] sm:$0xff]
      %v572 = vld [vmem:[%s561 + $0x50] sm:$0xff]
      %v573 = vld [vmem:[%s561 + $0x58] sm:$0xff]
      %v574 = vld [vmem:[%s561 + $0x60] sm:$0xff]
      %v575 = vld [vmem:[%s561 + $0x68] sm:$0xff]
      %v576 = vld [vmem:[%s561 + $0x70] sm:$0xff]
      %v577 = vld [vmem:[%s561 + $0x78] sm:$0xff]
      %578 = vmatpush.msra.mxu0 %v577
      %579 = vmatpush.msra.mxu0 %v576
      %580 = vmatpush.msra.mxu0 %v575
      %581 = vmatpush.msra.mxu0 %v574
      %582 = vmatpush.msra.mxu0 %v573
      %583 = vmatpush.msra.mxu0 %v572
      %584 = vmatpush.msra.mxu0 %v571
      %585 = vmatpush.msra.mxu0 %v570
      %586 = vmatpush.msra.mxu0 %v569
      %587 = vmatpush.msra.mxu0 %v568
      %588 = vmatpush.msra.mxu0 %v567
      %589 = vmatpush.msra.mxu0 %v566
      %590 = vmatpush.msra.mxu0 %v565
      %591 = vmatpush.msra.mxu0 %v564
      %592 = vmatpush.msra.mxu0 %v563
      %593 = vmatpush.msra.mxu0 %v562
      %594 = vmatmul.f32.gmra.mxu0 %v553
      %v595 = vpop.f32.mrf.mxu0
      %v596 = vadd.f32 0.0, %v595
      %597 = vmatmul.f32.gmra.mxu0 %v554
      %v598 = vpop.f32.mrf.mxu0
      %v599 = vadd.f32 0.0, %v598
      %600 = vmatmul.f32.gmra.mxu0 %v555
      %v601 = vpop.f32.mrf.mxu0
      %v602 = vadd.f32 0.0, %v601
      %603 = vmatmul.f32.gmra.mxu0 %v556
      %v604 = vpop.f32.mrf.mxu0
      %v605 = vadd.f32 0.0, %v604
      %606 = vmatmul.f32.gmra.mxu0 %v557
      %v607 = vpop.f32.mrf.mxu0
      %v608 = vadd.f32 0.0, %v607
      %609 = vmatmul.f32.gmra.mxu0 %v558
      %v610 = vpop.f32.mrf.mxu0
      %v611 = vadd.f32 0.0, %v610
      %612 = vmatmul.f32.gmra.mxu0 %v559
      %v613 = vpop.f32.mrf.mxu0
      %v614 = vadd.f32 0.0, %v613
      %615 = vmatmul.f32.gmra.mxu0 %v560
      %v616 = vpop.f32.mrf.mxu0
      %v617 = vadd.f32 0.0, %v616
      %618 = vdwg.mxu0
      %v619 = vadd.f32 %v545, %v596
      %v620 = vadd.f32 %v546, %v599
      %v621 = vadd.f32 %v547, %v602
      %v622 = vadd.f32 %v548, %v605
      %v623 = vadd.f32 %v549, %v608
      %v624 = vadd.f32 %v550, %v611
      %v625 = vadd.f32 %v551, %v614
      %v626 = vadd.f32 %v552, %v617
      %v627 = vld [vmem:[%s265 + $0x2] sm:$0xff]
      %v628 = vld [vmem:[%s265 + $0x12] sm:$0xff]
      %v629 = vld [vmem:[%s265 + $0x22] sm:$0xff]
      %v630 = vld [vmem:[%s265 + $0x32] sm:$0xff]
      %v631 = vld [vmem:[%s265 + $0x42] sm:$0xff]
      %v632 = vld [vmem:[%s265 + $0x52] sm:$0xff]
      %v633 = vld [vmem:[%s265 + $0x62] sm:$0xff]
      %v634 = vld [vmem:[%s265 + $0x72] sm:$0xff]
      %s635 = scalar_lea.vmem %s2, 640
      %v636 = vld [vmem:[%s635] sm:$0xff]
      %v637 = vld [vmem:[%s635 + $0x8] sm:$0xff]
      %v638 = vld [vmem:[%s635 + $0x10] sm:$0xff]
      %v639 = vld [vmem:[%s635 + $0x18] sm:$0xff]
      %v640 = vld [vmem:[%s635 + $0x20] sm:$0xff]
      %v641 = vld [vmem:[%s635 + $0x28] sm:$0xff]
      %v642 = vld [vmem:[%s635 + $0x30] sm:$0xff]
      %v643 = vld [vmem:[%s635 + $0x38] sm:$0xff]
      %v644 = vld [vmem:[%s635 + $0x40] sm:$0xff]
      %v645 = vld [vmem:[%s635 + $0x48] sm:$0xff]
      %v646 = vld [vmem:[%s635 + $0x50] sm:$0xff]
      %v647 = vld [vmem:[%s635 + $0x58] sm:$0xff]
      %v648 = vld [vmem:[%s635 + $0x60] sm:$0xff]
      %v649 = vld [vmem:[%s635 + $0x68] sm:$0xff]
      %v650 = vld [vmem:[%s635 + $0x70] sm:$0xff]
      %v651 = vld [vmem:[%s635 + $0x78] sm:$0xff]
      %652 = vmatpush.msra.mxu0 %v651
      %653 = vmatpush.msra.mxu0 %v650
      %654 = vmatpush.msra.mxu0 %v649
      %655 = vmatpush.msra.mxu0 %v648
      %656 = vmatpush.msra.mxu0 %v647
      %657 = vmatpush.msra.mxu0 %v646
      %658 = vmatpush.msra.mxu0 %v645
      %659 = vmatpush.msra.mxu0 %v644
      %660 = vmatpush.msra.mxu0 %v643
      %661 = vmatpush.msra.mxu0 %v642
      %662 = vmatpush.msra.mxu0 %v641
      %663 = vmatpush.msra.mxu0 %v640
      %664 = vmatpush.msra.mxu0 %v639
      %665 = vmatpush.msra.mxu0 %v638
      %666 = vmatpush.msra.mxu0 %v637
      %667 = vmatpush.msra.mxu0 %v636
      %668 = vmatmul.f32.gmra.mxu0 %v627
      %v669 = vpop.f32.mrf.mxu0
      %v670 = vadd.f32 0.0, %v669
      %671 = vmatmul.f32.gmra.mxu0 %v628
      %v672 = vpop.f32.mrf.mxu0
      %v673 = vadd.f32 0.0, %v672
      %674 = vmatmul.f32.gmra.mxu0 %v629
      %v675 = vpop.f32.mrf.mxu0
      %v676 = vadd.f32 0.0, %v675
      %677 = vmatmul.f32.gmra.mxu0 %v630
      %v678 = vpop.f32.mrf.mxu0
      %v679 = vadd.f32 0.0, %v678
      %680 = vmatmul.f32.gmra.mxu0 %v631
      %v681 = vpop.f32.mrf.mxu0
      %v682 = vadd.f32 0.0, %v681
      %683 = vmatmul.f32.gmra.mxu0 %v632
      %v684 = vpop.f32.mrf.mxu0
      %v685 = vadd.f32 0.0, %v684
      %686 = vmatmul.f32.gmra.mxu0 %v633
      %v687 = vpop.f32.mrf.mxu0
      %v688 = vadd.f32 0.0, %v687
      %689 = vmatmul.f32.gmra.mxu0 %v634
      %v690 = vpop.f32.mrf.mxu0
      %v691 = vadd.f32 0.0, %v690
      %692 = vdwg.mxu0
      %v693 = vadd.f32 %v619, %v670
      %v694 = vadd.f32 %v620, %v673
      %v695 = vadd.f32 %v621, %v676
      %v696 = vadd.f32 %v622, %v679
      %v697 = vadd.f32 %v623, %v682
      %v698 = vadd.f32 %v624, %v685
      %v699 = vadd.f32 %v625, %v688
      %v700 = vadd.f32 %v626, %v691
      %s701 = scalar_lea.vmem [#allocation2], 32
      %v702 = vld [vmem:[%s701] sm:$0xff]
      %v703 = vld [vmem:[%s701 + $0x10] sm:$0xff]
      %v704 = vld [vmem:[%s701 + $0x20] sm:$0xff]
      %v705 = vld [vmem:[%s701 + $0x30] sm:$0xff]
      %v706 = vld [vmem:[%s701 + $0x40] sm:$0xff]
      %v707 = vld [vmem:[%s701 + $0x50] sm:$0xff]
      %v708 = vld [vmem:[%s701 + $0x60] sm:$0xff]
      %v709 = vld [vmem:[%s701 + $0x70] sm:$0xff]
      %s710 = scalar_lea.vmem %s2, 768
      %v711 = vld [vmem:[%s710] sm:$0xff]
      %v712 = vld [vmem:[%s710 + $0x8] sm:$0xff]
      %v713 = vld [vmem:[%s710 + $0x10] sm:$0xff]
      %v714 = vld [vmem:[%s710 + $0x18] sm:$0xff]
      %v715 = vld [vmem:[%s710 + $0x20] sm:$0xff]
      %v716 = vld [vmem:[%s710 + $0x28] sm:$0xff]
      %v717 = vld [vmem:[%s710 + $0x30] sm:$0xff]
      %v718 = vld [vmem:[%s710 + $0x38] sm:$0xff]
      %v719 = vld [vmem:[%s710 + $0x40] sm:$0xff]
      %v720 = vld [vmem:[%s710 + $0x48] sm:$0xff]
      %v721 = vld [vmem:[%s710 + $0x50] sm:$0xff]
      %v722 = vld [vmem:[%s710 + $0x58] sm:$0xff]
      %v723 = vld [vmem:[%s710 + $0x60] sm:$0xff]
      %v724 = vld [vmem:[%s710 + $0x68] sm:$0xff]
      %v725 = vld [vmem:[%s710 + $0x70] sm:$0xff]
      %v726 = vld [vmem:[%s710 + $0x78] sm:$0xff]
      %727 = vmatpush.msra.mxu0 %v726
      %728 = vmatpush.msra.mxu0 %v725
      %729 = vmatpush.msra.mxu0 %v724
      %730 = vmatpush.msra.mxu0 %v723
      %731 = vmatpush.msra.mxu0 %v722
      %732 = vmatpush.msra.mxu0 %v721
      %733 = vmatpush.msra.mxu0 %v720
      %734 = vmatpush.msra.mxu0 %v719
      %735 = vmatpush.msra.mxu0 %v718
      %736 = vmatpush.msra.mxu0 %v717
      %737 = vmatpush.msra.mxu0 %v716
      %738 = vmatpush.msra.mxu0 %v715
      %739 = vmatpush.msra.mxu0 %v714
      %740 = vmatpush.msra.mxu0 %v713
      %741 = vmatpush.msra.mxu0 %v712
      %742 = vmatpush.msra.mxu0 %v711
      %743 = vmatmul.f32.gmra.mxu0 %v702
      %v744 = vpop.f32.mrf.mxu0
      %v745 = vadd.f32 0.0, %v744
      %746 = vmatmul.f32.gmra.mxu0 %v703
      %v747 = vpop.f32.mrf.mxu0
      %v748 = vadd.f32 0.0, %v747
      %749 = vmatmul.f32.gmra.mxu0 %v704
      %v750 = vpop.f32.mrf.mxu0
      %v751 = vadd.f32 0.0, %v750
      %752 = vmatmul.f32.gmra.mxu0 %v705
      %v753 = vpop.f32.mrf.mxu0
      %v754 = vadd.f32 0.0, %v753
      %755 = vmatmul.f32.gmra.mxu0 %v706
      %v756 = vpop.f32.mrf.mxu0
      %v757 = vadd.f32 0.0, %v756
      %758 = vmatmul.f32.gmra.mxu0 %v707
      %v759 = vpop.f32.mrf.mxu0
      %v760 = vadd.f32 0.0, %v759
      %761 = vmatmul.f32.gmra.mxu0 %v708
      %v762 = vpop.f32.mrf.mxu0
      %v763 = vadd.f32 0.0, %v762
      %764 = vmatmul.f32.gmra.mxu0 %v709
      %v765 = vpop.f32.mrf.mxu0
      %v766 = vadd.f32 0.0, %v765
      %767 = vdwg.mxu0
      %v768 = vadd.f32 %v693, %v745
      %v769 = vadd.f32 %v694, %v748
      %v770 = vadd.f32 %v695, %v751
      %v771 = vadd.f32 %v696, %v754
      %v772 = vadd.f32 %v697, %v757
      %v773 = vadd.f32 %v698, %v760
      %v774 = vadd.f32 %v699, %v763
      %v775 = vadd.f32 %v700, %v766
      %v776 = vld [vmem:[%s701 + $0x1] sm:$0xff]
      %v777 = vld [vmem:[%s701 + $0x11] sm:$0xff]
      %v778 = vld [vmem:[%s701 + $0x21] sm:$0xff]
      %v779 = vld [vmem:[%s701 + $0x31] sm:$0xff]
      %v780 = vld [vmem:[%s701 + $0x41] sm:$0xff]
      %v781 = vld [vmem:[%s701 + $0x51] sm:$0xff]
      %v782 = vld [vmem:[%s701 + $0x61] sm:$0xff]
      %v783 = vld [vmem:[%s701 + $0x71] sm:$0xff]
      %s784 = scalar_lea.vmem %s2, 896
      %v785 = vld [vmem:[%s784] sm:$0xff]
      %v786 = vld [vmem:[%s784 + $0x8] sm:$0xff]
      %v787 = vld [vmem:[%s784 + $0x10] sm:$0xff]
      %v788 = vld [vmem:[%s784 + $0x18] sm:$0xff]
      %v789 = vld [vmem:[%s784 + $0x20] sm:$0xff]
      %v790 = vld [vmem:[%s784 + $0x28] sm:$0xff]
      %v791 = vld [vmem:[%s784 + $0x30] sm:$0xff]
      %v792 = vld [vmem:[%s784 + $0x38] sm:$0xff]
      %v793 = vld [vmem:[%s784 + $0x40] sm:$0xff]
      %v794 = vld [vmem:[%s784 + $0x48] sm:$0xff]
      %v795 = vld [vmem:[%s784 + $0x50] sm:$0xff]
      %v796 = vld [vmem:[%s784 + $0x58] sm:$0xff]
      %v797 = vld [vmem:[%s784 + $0x60] sm:$0xff]
      %v798 = vld [vmem:[%s784 + $0x68] sm:$0xff]
      %v799 = vld [vmem:[%s784 + $0x70] sm:$0xff]
      %v800 = vld [vmem:[%s784 + $0x78] sm:$0xff]
      %801 = vmatpush.msra.mxu0 %v800
      %802 = vmatpush.msra.mxu0 %v799
      %803 = vmatpush.msra.mxu0 %v798
      %804 = vmatpush.msra.mxu0 %v797
      %805 = vmatpush.msra.mxu0 %v796
      %806 = vmatpush.msra.mxu0 %v795
      %807 = vmatpush.msra.mxu0 %v794
      %808 = vmatpush.msra.mxu0 %v793
      %809 = vmatpush.msra.mxu0 %v792
      %810 = vmatpush.msra.mxu0 %v791
      %811 = vmatpush.msra.mxu0 %v790
      %812 = vmatpush.msra.mxu0 %v789
      %813 = vmatpush.msra.mxu0 %v788
      %814 = vmatpush.msra.mxu0 %v787
      %815 = vmatpush.msra.mxu0 %v786
      %816 = vmatpush.msra.mxu0 %v785
      %817 = vmatmul.f32.gmra.mxu0 %v776
      %v818 = vpop.f32.mrf.mxu0
      %v819 = vadd.f32 0.0, %v818
      %820 = vmatmul.f32.gmra.mxu0 %v777
      %v821 = vpop.f32.mrf.mxu0
      %v822 = vadd.f32 0.0, %v821
      %823 = vmatmul.f32.gmra.mxu0 %v778
      %v824 = vpop.f32.mrf.mxu0
      %v825 = vadd.f32 0.0, %v824
      %826 = vmatmul.f32.gmra.mxu0 %v779
      %v827 = vpop.f32.mrf.mxu0
      %v828 = vadd.f32 0.0, %v827
      %829 = vmatmul.f32.gmra.mxu0 %v780
      %v830 = vpop.f32.mrf.mxu0
      %v831 = vadd.f32 0.0, %v830
      %832 = vmatmul.f32.gmra.mxu0 %v781
      %v833 = vpop.f32.mrf.mxu0
      %v834 = vadd.f32 0.0, %v833
      %835 = vmatmul.f32.gmra.mxu0 %v782
      %v836 = vpop.f32.mrf.mxu0
      %v837 = vadd.f32 0.0, %v836
      %838 = vmatmul.f32.gmra.mxu0 %v783
      %v839 = vpop.f32.mrf.mxu0
      %v840 = vadd.f32 0.0, %v839
      %841 = vdwg.mxu0
      %v842 = vadd.f32 %v768, %v819
      %v843 = vadd.f32 %v769, %v822
      %v844 = vadd.f32 %v770, %v825
      %v845 = vadd.f32 %v771, %v828
      %v846 = vadd.f32 %v772, %v831
      %v847 = vadd.f32 %v773, %v834
      %v848 = vadd.f32 %v774, %v837
      %v849 = vadd.f32 %v775, %v840
      %v850 = vld [vmem:[%s701 + $0x2] sm:$0xff]
      %v851 = vld [vmem:[%s701 + $0x12] sm:$0xff]
      %v852 = vld [vmem:[%s701 + $0x22] sm:$0xff]
      %v853 = vld [vmem:[%s701 + $0x32] sm:$0xff]
      %v854 = vld [vmem:[%s701 + $0x42] sm:$0xff]
      %v855 = vld [vmem:[%s701 + $0x52] sm:$0xff]
      %v856 = vld [vmem:[%s701 + $0x62] sm:$0xff]
      %v857 = vld [vmem:[%s701 + $0x72] sm:$0xff]
      %s858 = scalar_lea.vmem %s2, 1024
      %v859 = vld [vmem:[%s858] sm:$0xff]
      %v860 = vld [vmem:[%s858 + $0x8] sm:$0xff]
      %v861 = vld [vmem:[%s858 + $0x10] sm:$0xff]
      %v862 = vld [vmem:[%s858 + $0x18] sm:$0xff]
      %v863 = vld [vmem:[%s858 + $0x20] sm:$0xff]
      %v864 = vld [vmem:[%s858 + $0x28] sm:$0xff]
      %v865 = vld [vmem:[%s858 + $0x30] sm:$0xff]
      %v866 = vld [vmem:[%s858 + $0x38] sm:$0xff]
      %v867 = vld [vmem:[%s858 + $0x40] sm:$0xff]
      %v868 = vld [vmem:[%s858 + $0x48] sm:$0xff]
      %v869 = vld [vmem:[%s858 + $0x50] sm:$0xff]
      %v870 = vld [vmem:[%s858 + $0x58] sm:$0xff]
      %v871 = vld [vmem:[%s858 + $0x60] sm:$0xff]
      %v872 = vld [vmem:[%s858 + $0x68] sm:$0xff]
      %v873 = vld [vmem:[%s858 + $0x70] sm:$0xff]
      %v874 = vld [vmem:[%s858 + $0x78] sm:$0xff]
      %875 = vmatpush.msra.mxu0 %v874
      %876 = vmatpush.msra.mxu0 %v873
      %877 = vmatpush.msra.mxu0 %v872
      %878 = vmatpush.msra.mxu0 %v871
      %879 = vmatpush.msra.mxu0 %v870
      %880 = vmatpush.msra.mxu0 %v869
      %881 = vmatpush.msra.mxu0 %v868
      %882 = vmatpush.msra.mxu0 %v867
      %883 = vmatpush.msra.mxu0 %v866
      %884 = vmatpush.msra.mxu0 %v865
      %885 = vmatpush.msra.mxu0 %v864
      %886 = vmatpush.msra.mxu0 %v863
      %887 = vmatpush.msra.mxu0 %v862
      %888 = vmatpush.msra.mxu0 %v861
      %889 = vmatpush.msra.mxu0 %v860
      %890 = vmatpush.msra.mxu0 %v859
      %891 = vmatmul.f32.gmra.mxu0 %v850
      %v892 = vpop.f32.mrf.mxu0
      %v893 = vadd.f32 0.0, %v892
      %894 = vmatmul.f32.gmra.mxu0 %v851
      %v895 = vpop.f32.mrf.mxu0
      %v896 = vadd.f32 0.0, %v895
      %897 = vmatmul.f32.gmra.mxu0 %v852
      %v898 = vpop.f32.mrf.mxu0
      %v899 = vadd.f32 0.0, %v898
      %900 = vmatmul.f32.gmra.mxu0 %v853
      %v901 = vpop.f32.mrf.mxu0
      %v902 = vadd.f32 0.0, %v901
      %903 = vmatmul.f32.gmra.mxu0 %v854
      %v904 = vpop.f32.mrf.mxu0
      %v905 = vadd.f32 0.0, %v904
      %906 = vmatmul.f32.gmra.mxu0 %v855
      %v907 = vpop.f32.mrf.mxu0
      %v908 = vadd.f32 0.0, %v907
      %909 = vmatmul.f32.gmra.mxu0 %v856
      %v910 = vpop.f32.mrf.mxu0
      %v911 = vadd.f32 0.0, %v910
      %912 = vmatmul.f32.gmra.mxu0 %v857
      %v913 = vpop.f32.mrf.mxu0
      %v914 = vadd.f32 0.0, %v913
      %915 = vdwg.mxu0
      %v916 = vadd.f32 %v842, %v893
      %v917 = vadd.f32 %v843, %v896
      %v918 = vadd.f32 %v844, %v899
      %v919 = vadd.f32 %v845, %v902
      %v920 = vadd.f32 %v846, %v905
      %v921 = vadd.f32 %v847, %v908
      %v922 = vadd.f32 %v848, %v911
      %v923 = vadd.f32 %v849, %v914
      %924 = vst [vmem:[%s204] sm:$0xff] %v916
      %925 = vst [vmem:[%s204 + $0x8] sm:$0xff] %v917
      %926 = vst [vmem:[%s204 + $0x10] sm:$0xff] %v918
      %927 = vst [vmem:[%s204 + $0x18] sm:$0xff] %v919
      %928 = vst [vmem:[%s204 + $0x20] sm:$0xff] %v920
      %929 = vst [vmem:[%s204 + $0x28] sm:$0xff] %v921
      %930 = vst [vmem:[%s204 + $0x30] sm:$0xff] %v922
      %931 = vst [vmem:[%s204 + $0x38] sm:$0xff] %v923
      %v932 = vadd.f32 %v916, %v917
      %v933 = vadd.f32 %v932, %v918
      %v934 = vadd.f32 %v933, %v919
      %v935 = vadd.f32 %v934, %v920
      %v936 = vadd.f32 %v935, %v921
      %v937 = vadd.f32 %v936, %v922
      %v938 = vadd.f32 %v937, %v923
      %v939 = vrot.slane %v938, 4
      %v940 = vadd.f32 %v938, %v939
      %v941 = vrot.slane %v940, 2
      %v942 = vadd.f32 %v940, %v941
      %v943 = vrot.slane %v942, 1
      %v944 = vadd.f32 %v942, %v943
      %v945 = vmul.f32 %v916, %v916
      %v946 = vmul.f32 %v917, %v917
      %v947 = vmul.f32 %v918, %v918
      %v948 = vmul.f32 %v919, %v919
      %v949 = vmul.f32 %v920, %v920
      %v950 = vmul.f32 %v921, %v921
      %v951 = vmul.f32 %v922, %v922
      %v952 = vmul.f32 %v923, %v923
      %v953 = vadd.f32 %v945, %v946
      %v954 = vadd.f32 %v953, %v947
      %v955 = vadd.f32 %v954, %v948
      %v956 = vadd.f32 %v955, %v949
      %v957 = vadd.f32 %v956, %v950
      %v958 = vadd.f32 %v957, %v951
      %v959 = vadd.f32 %v958, %v952
      %v960 = vrot.slane %v959, 4
      %v961 = vadd.f32 %v959, %v960
      %v962 = vrot.slane %v961, 2
      %v963 = vadd.f32 %v961, %v962
      %v964 = vrot.slane %v963, 1
      %v965 = vadd.f32 %v963, %v964
      %vm966 = vcmask 1040384
      %v967 = vsel %vm966, %v944, %v965
      %968 = vst [vmem:[%s208] sm:$0x3] %v967
      %p969 = scmp.lt.s32.totalorder %s16, 1
      %s970 = scalar_select %p969, %s16, 1
      %s971 = smul.addr %s970, 8
      %s972 = smul.addr %s971, 8
      %s973 = scalar_lea.vmem %s3, %s972
      %p974 = scmp.lt.s32.totalorder %s16, 1
      %s975 = scalar_select %p974, %s16, 1
      %s976 = smul.addr %s975, 2
      %s977 = scalar_lea.vmem %s4, %s976
      // Predicated region
      $region33: #{conv_block_forward.5} parent=31 // pred_check
        %p978 = pneg %p102
      $region34: #{conv_block_forward.5} parent=31 // pred_check_branch
        %980 = sbr.rel (%p978) target = $region36
      $region35: #{conv_block_forward.5} parent=31 // pred_region
        _
      $region36: #{conv_block_forward.5} parent=31 // pred_fallthru
        _
      // Predicated region
      $region37: #{conv_block_forward.5} parent=31 // pred_check
        %p981 = pneg %p128
      $region38: #{conv_block_forward.5} parent=31 // pred_check_branch
        %983 = sbr.rel (%p981) target = $region40
      $region39: #{conv_block_forward.5} parent=31 // pred_region
        _
      $region40: #{conv_block_forward.5} parent=31 // pred_fallthru
        _
    $region32: #{conv_block_forward.5} parent=5 // pred_fallthru
      _
    %p984 = scmp.le.s32.totalorder 2, %s11
    // Predicated region
    $region41: #{conv_block_forward.5} parent=5 // pred_check
      %p985 = pneg %p984
    $region42: #{conv_block_forward.5} parent=5 // pred_check_branch
      %987 = sbr.rel (%p985) target = $region44
    $region43: #{conv_block_forward.5} parent=5 // pred_region
      %s988 = ssub.s32 %s11, 2
      // Predicated region
      $region45: #{conv_block_forward.5} parent=43 // pred_check
        %p989 = pneg %p108
      $region46: #{conv_block_forward.5} parent=43 // pred_check_branch
        %991 = sbr.rel (%p989) target = $region48
      $region47: #{conv_block_forward.5} parent=43 // pred_region
        %p992 = scmp.lt.s32.totalorder %s17, 1
        %s993 = scalar_select %p992, %s17, 1
        %s994 = smul.addr %s993, 8
        %s995 = smul.addr %s994, 8
        %s996 = scalar_lea.vmem %s3, %s995
      $region48: #{conv_block_forward.5} parent=43 // pred_fallthru
        _
      // Predicated region
      $region49: #{conv_block_forward.5} parent=43 // pred_check
        %p997 = pneg %p134
      $region50: #{conv_block_forward.5} parent=43 // pred_check_branch
        %999 = sbr.rel (%p997) target = $region52
      $region51: #{conv_block_forward.5} parent=43 // pred_region
        %p1000 = scmp.lt.s32.totalorder %s17, 1
        %s1001 = scalar_select %p1000, %s17, 1
        %s1002 = smul.addr %s1001, 2
        %s1003 = scalar_lea.vmem %s4, %s1002
      $region52: #{conv_block_forward.5} parent=43 // pred_fallthru
        _
    $region44: #{conv_block_forward.5} parent=5 // pred_fallthru
      _
  $region6: #{conv_block_forward.5} parent=0 // loop_footer
    %s15 = sadd.s32 1, %s11
  $region7: #{conv_block_forward.5} parent=0 // loop_footer_branch
    %10 = sbr.rel target = $region3
  $region8: #{conv_block_forward.5} parent=0 // loop_exit
    _

// kernel: conv_block_forward.7
$region0: #{conv_block_forward.7}
  #allocation0 [shape = 'u32[]', space=smem, size = 0x4, offset = 0x4, fixed_abs, tag = 'smem constant byte address 0x4 - core index']
  #allocation1 [shape = 'u32[72,128]{1,0:T(1,128)}', space=vmem, size = 0x9000, scoped, tag = 'internal scratch']
  %s0 = inlined_call_operand.vmem [shape: f32[128,128], index: 0, kind: input, shape index: {}]
  %s1 = inlined_call_operand.vmem [shape: f32[128,128], index: 1, kind: input, shape index: {}]
  %s2 = inlined_call_operand.vmem [shape: f32[4,128], index: 2, kind: input, shape index: {}]
  %s3 = inlined_call_operand.vmem [shape: f32[128,128], index: 3, kind: output, shape index: {}]
  %s4 = sld [smem:[#allocation0]]
  $region22: #{conv_block_forward.7} parent=0
    _
  %s6 = ssub.s32 1, %s4
  %s7 = scalar_select 0, %s6, %s4
  // Predicated region
  $region2: #{conv_block_forward.7} parent=0 // pred_check
    _
  $region3: #{conv_block_forward.7} parent=0 // pred_check_branch
    %9 = sbr.rel (0) target = $region5
  $region4: #{conv_block_forward.7} parent=0 // pred_region
    _
  $region5: #{conv_block_forward.7} parent=0 // pred_fallthru
    _
  // Predicated region
  $region6: #{conv_block_forward.7} parent=0 // pred_check
    _
  $region7: #{conv_block_forward.7} parent=0 // pred_check_branch
    %11 = sbr.rel (0) target = $region9
  $region8: #{conv_block_forward.7} parent=0 // pred_region
    _
  $region9: #{conv_block_forward.7} parent=0 // pred_fallthru
    _
  // Predicated region
  $region10: #{conv_block_forward.7} parent=0 // pred_check
    _
  $region11: #{conv_block_forward.7} parent=0 // pred_check_branch
    %13 = sbr.rel (0) target = $region13
  $region12: #{conv_block_forward.7} parent=0 // pred_region
    _
  $region13: #{conv_block_forward.7} parent=0 // pred_fallthru
    _
  %v14 = vld [vmem:[%s0] sm:$0xff]
  %v15 = vld [vmem:[%s0 + $0x8] sm:$0xff]
  %v16 = vld [vmem:[%s0 + $0x10] sm:$0xff]
  %v17 = vld [vmem:[%s0 + $0x18] sm:$0xff]
  %v18 = vld [vmem:[%s0 + $0x20] sm:$0xff]
  %v19 = vld [vmem:[%s0 + $0x28] sm:$0xff]
  %v20 = vld [vmem:[%s0 + $0x30] sm:$0xff]
  %v21 = vld [vmem:[%s0 + $0x38] sm:$0xff]
  %v22 = vld [vmem:[%s0 + $0x40] sm:$0xff]
  %v23 = vld [vmem:[%s0 + $0x48] sm:$0xff]
  %v24 = vld [vmem:[%s0 + $0x50] sm:$0xff]
  %v25 = vld [vmem:[%s0 + $0x58] sm:$0xff]
  %v26 = vld [vmem:[%s0 + $0x60] sm:$0xff]
  %v27 = vld [vmem:[%s0 + $0x68] sm:$0xff]
  %v28 = vld [vmem:[%s0 + $0x70] sm:$0xff]
  %v29 = vld [vmem:[%s0 + $0x78] sm:$0xff]
  %v30 = vld [vmem:[%s2] sm:$0x1]
  %v31 = vperm.slane %v30, 0
  %v32 = vmul.f32 %v14, %v31
  %v33 = vmul.f32 %v15, %v31
  %v34 = vmul.f32 %v16, %v31
  %v35 = vmul.f32 %v17, %v31
  %v36 = vmul.f32 %v18, %v31
  %v37 = vmul.f32 %v19, %v31
  %v38 = vmul.f32 %v20, %v31
  %v39 = vmul.f32 %v21, %v31
  %v40 = vmul.f32 %v22, %v31
  %v41 = vmul.f32 %v23, %v31
  %v42 = vmul.f32 %v24, %v31
  %v43 = vmul.f32 %v25, %v31
  %v44 = vmul.f32 %v26, %v31
  %v45 = vmul.f32 %v27, %v31
  %v46 = vmul.f32 %v28, %v31
  %v47 = vmul.f32 %v29, %v31
  %v48 = vld [vmem:[%s2 + $0x1] sm:$0x1]
  %v49 = vperm.slane %v48, 0
  %v50 = vadd.f32 %v32, %v49
  %v51 = vadd.f32 %v33, %v49
  %v52 = vadd.f32 %v34, %v49
  %v53 = vadd.f32 %v35, %v49
  %v54 = vadd.f32 %v36, %v49
  %v55 = vadd.f32 %v37, %v49
  %v56 = vadd.f32 %v38, %v49
  %v57 = vadd.f32 %v39, %v49
  %v58 = vadd.f32 %v40, %v49
  %v59 = vadd.f32 %v41, %v49
  %v60 = vadd.f32 %v42, %v49
  %v61 = vadd.f32 %v43, %v49
  %v62 = vadd.f32 %v44, %v49
  %v63 = vadd.f32 %v45, %v49
  %v64 = vadd.f32 %v46, %v49
  %v65 = vadd.f32 %v47, %v49
  %v66 = vld [vmem:[%s1] sm:$0xff]
  %v67 = vld [vmem:[%s1 + $0x8] sm:$0xff]
  %v68 = vld [vmem:[%s1 + $0x10] sm:$0xff]
  %v69 = vld [vmem:[%s1 + $0x18] sm:$0xff]
  %v70 = vld [vmem:[%s1 + $0x20] sm:$0xff]
  %v71 = vld [vmem:[%s1 + $0x28] sm:$0xff]
  %v72 = vld [vmem:[%s1 + $0x30] sm:$0xff]
  %v73 = vld [vmem:[%s1 + $0x38] sm:$0xff]
  %v74 = vld [vmem:[%s1 + $0x40] sm:$0xff]
  %v75 = vld [vmem:[%s1 + $0x48] sm:$0xff]
  %v76 = vld [vmem:[%s1 + $0x50] sm:$0xff]
  %v77 = vld [vmem:[%s1 + $0x58] sm:$0xff]
  %v78 = vld [vmem:[%s1 + $0x60] sm:$0xff]
  %v79 = vld [vmem:[%s1 + $0x68] sm:$0xff]
  %v80 = vld [vmem:[%s1 + $0x70] sm:$0xff]
  %v81 = vld [vmem:[%s1 + $0x78] sm:$0xff]
  %v82 = vld [vmem:[%s2 + $0x2] sm:$0x1]
  %v83 = vperm.slane %v82, 0
  %v84 = vmul.f32 %v66, %v83
  %v85 = vmul.f32 %v67, %v83
  %v86 = vmul.f32 %v68, %v83
  %v87 = vmul.f32 %v69, %v83
  %v88 = vmul.f32 %v70, %v83
  %v89 = vmul.f32 %v71, %v83
  %v90 = vmul.f32 %v72, %v83
  %v91 = vmul.f32 %v73, %v83
  %v92 = vmul.f32 %v74, %v83
  %v93 = vmul.f32 %v75, %v83
  %v94 = vmul.f32 %v76, %v83
  %v95 = vmul.f32 %v77, %v83
  %v96 = vmul.f32 %v78, %v83
  %v97 = vmul.f32 %v79, %v83
  %v98 = vmul.f32 %v80, %v83
  %v99 = vmul.f32 %v81, %v83
  %v100 = vadd.f32 %v50, %v84
  %v101 = vadd.f32 %v51, %v85
  %v102 = vadd.f32 %v52, %v86
  %v103 = vadd.f32 %v53, %v87
  %v104 = vadd.f32 %v54, %v88
  %v105 = vadd.f32 %v55, %v89
  %v106 = vadd.f32 %v56, %v90
  %v107 = vadd.f32 %v57, %v91
  %v108 = vadd.f32 %v58, %v92
  %v109 = vadd.f32 %v59, %v93
  %v110 = vadd.f32 %v60, %v94
  %v111 = vadd.f32 %v61, %v95
  %v112 = vadd.f32 %v62, %v96
  %v113 = vadd.f32 %v63, %v97
  %v114 = vadd.f32 %v64, %v98
  %v115 = vadd.f32 %v65, %v99
  %v116 = vld [vmem:[%s2 + $0x3] sm:$0x1]
  %v117 = vperm.slane %v116, 0
  %v118 = vadd.f32 %v100, %v117
  %v119 = vadd.f32 %v101, %v117
  %v120 = vadd.f32 %v102, %v117
  %v121 = vadd.f32 %v103, %v117
  %v122 = vadd.f32 %v104, %v117
  %v123 = vadd.f32 %v105, %v117
  %v124 = vadd.f32 %v106, %v117
  %v125 = vadd.f32 %v107, %v117
  %v126 = vadd.f32 %v108, %v117
  %v127 = vadd.f32 %v109, %v117
  %v128 = vadd.f32 %v110, %v117
  %v129 = vadd.f32 %v111, %v117
  %v130 = vadd.f32 %v112, %v117
  %v131 = vadd.f32 %v113, %v117
  %v132 = vadd.f32 %v114, %v117
  %v133 = vadd.f32 %v115, %v117
  %v134 = vmax.f32 %v118, 0.0
  %v135 = vmax.f32 %v119, 0.0
  %v136 = vmax.f32 %v120, 0.0
  %v137 = vmax.f32 %v121, 0.0
  %v138 = vmax.f32 %v122, 0.0
  %v139 = vmax.f32 %v123, 0.0
  %v140 = vmax.f32 %v124, 0.0
  %v141 = vmax.f32 %v125, 0.0
  %v142 = vmax.f32 %v126, 0.0
  %v143 = vmax.f32 %v127, 0.0
  %v144 = vmax.f32 %v128, 0.0
  %v145 = vmax.f32 %v129, 0.0
  %v146 = vmax.f32 %v130, 0.0
  %v147 = vmax.f32 %v131, 0.0
  %v148 = vmax.f32 %v132, 0.0
  %v149 = vmax.f32 %v133, 0.0
  %150 = vst [vmem:[%s3] sm:$0xff] %v134
  %151 = vst [vmem:[%s3 + $0x8] sm:$0xff] %v135
  %152 = vst [vmem:[%s3 + $0x10] sm:$0xff] %v136
  %153 = vst [vmem:[%s3 + $0x18] sm:$0xff] %v137
  %154 = vst [vmem:[%s3 + $0x20] sm:$0xff] %v138
  %155 = vst [vmem:[%s3 + $0x28] sm:$0xff] %v139
  %156 = vst [vmem:[%s3 + $0x30] sm:$0xff] %v140
  %157 = vst [vmem:[%s3 + $0x38] sm:$0xff] %v141
  %158 = vst [vmem:[%s3 + $0x40] sm:$0xff] %v142
  %159 = vst [vmem:[%s3 + $0x48] sm:$0xff] %v143
  %160 = vst [vmem:[%s3 + $0x50] sm:$0xff] %v144
  %161 = vst [vmem:[%s3 + $0x58] sm:$0xff] %v145
  %162 = vst [vmem:[%s3 + $0x60] sm:$0xff] %v146
  %163 = vst [vmem:[%s3 + $0x68] sm:$0xff] %v147
  %164 = vst [vmem:[%s3 + $0x70] sm:$0xff] %v148
  %165 = vst [vmem:[%s3 + $0x78] sm:$0xff] %v149
  // Predicated region
  $region14: #{conv_block_forward.7} parent=0 // pred_check
    _
  $region15: #{conv_block_forward.7} parent=0 // pred_check_branch
    %167 = sbr.rel (0) target = $region17
  $region16: #{conv_block_forward.7} parent=0 // pred_region
    _
  $region17: #{conv_block_forward.7} parent=0 // pred_fallthru
    _
  // Predicated region
  $region18: #{conv_block_forward.7} parent=0 // pred_check
    _
  $region19: #{conv_block_forward.7} parent=0 // pred_check_branch
    %169 = sbr.rel (0) target = $region21
  $region20: #{conv_block_forward.7} parent=0 // pred_region
    _
  $region21: #{conv_block_forward.7} parent=0 // pred_fallthru
    _

</llo_original>
